<compile_context>
chip_gen: v7x
topology: tpu7x:2x2x1
jax: 0.10.0
libtpu: 0.0.40
codegen_flags: <defaults>
</compile_context>

<pallas_src>
import math

import jax
import jax.numpy as jnp
from jax.experimental import pallas as pl
from jax.experimental.pallas import tpu as pltpu


def _vmem_capacity_bytes():
    """Physical VMEM bytes of the local TPU generation (conservative fallback)."""
    try:
        info = pltpu.get_tpu_info()
        cap = getattr(info, "vmem_capacity_bytes", None)
        if cap:
            return int(cap)
    except Exception:
        pass
    return 64 * 1024 * 1024   # v7x per-TensorCore VMEM (most restrictive)


def _pick_block_batch(B, T, target_rows, prefer_min_steps=2):
    """Largest legal batch block Bb with Bb*T <= target_rows, preferring >= 2 grid steps (v7x megacore)."""
    def legal(bb):
        # block second-minor dim (Bb*T rows) must be %8 or the full extent
        return B % bb == 0 and ((bb * T) % 8 == 0 or bb == B)

    cands = [bb for bb in range(1, B + 1) if legal(bb)]
    pref = [bb for bb in cands if B // bb >= prefer_min_steps] or cands
    fit = [bb for bb in pref if bb * T <= target_rows]
    return max(fit) if fit else min(pref)


def multi_head_time_step_attention(x, params, *, use_bf16=False,
                                   out_dtype=jnp.float32, kv=None):
    """x: (B, T, dim_val) float32.  params: {'heads': [per-head dicts], 'w_fc': (H*dim_val, dim_val)}."""
    if kv is not None:
        # TODO(synk): cross-attention path (kv is not None) is not implemented.
        raise NotImplementedError("kv cross-attention path not implemented")

    B, T, dim_val = x.shape
    heads = params["heads"]
    H = len(heads)
    dim_attn = heads[0]["wq"].shape[1]
    scale = 1.0 / math.sqrt(float(dim_attn))

    # ---- parameter packing (one-time constant transforms, not runtime work) ----
    # fused QKV weight: columns = [Q of all heads | K of all heads | V of all heads]
    wq = jnp.concatenate([h["wq"] for h in heads], axis=1) * scale    # scale folded in
    wk = jnp.concatenate([h["wk"] for h in heads], axis=1)
    wv = jnp.concatenate([h["wv"] for h in heads], axis=1)
    w_qkv = jnp.concatenate([wq, wk, wv], axis=1)                     # (dim_val, H*(2*da+dv))

    bq = jnp.concatenate([h["bq"] for h in heads], axis=1) * scale
    bk = jnp.concatenate([h["bk"] for h in heads], axis=1)
    bv = jnp.concatenate([h["bv"] for h in heads], axis=1)
    b_qkv = jnp.concatenate([bq, bk, bv], axis=1)                     # (1, H*(2*da+dv))

    # PyTorch does stack(dim=-1).flatten(2) -> row order d*H + h.  The kernel
    # accumulates per-head, so gather head h's fc rows contiguously:
    # block h = w_fc.reshape(dv, H, dv)[:, h, :].
    w_fc = (params["w_fc"]
            .reshape(dim_val, H, dim_val)
            .transpose(1, 0, 2)
            .reshape(H * dim_val, dim_val))

    if use_bf16:
        x_in = x.astype(jnp.bfloat16)
        w_qkv = w_qkv.astype(jnp.bfloat16)
        w_fc = w_fc.astype(jnp.bfloat16)
    else:
        x_in = x

    nq = H * dim_attn
    nqkv = 2 * nq + H * dim_val

    # ---- per-generation tile sizing (review: bigger tiles, sized against VMEM) ----
    vmem_cap = _vmem_capacity_bytes()
    vmem_limit = int(min(vmem_cap // 2, 48 * 1024 * 1024))
    in_isz = 2 if use_bf16 else 4
    per_row = (2 * dim_val * in_isz                      # x block, double-buffered
               + nqkv * (4 + (2 if use_bf16 else 0))     # f32 qkv slab (+ bf16 copy)
               + 2 * T * 4                               # one head's score/prob tiles
               + 2 * dim_val * 4                         # oh + fc accumulator
               + 2 * max(dim_val, 128) * 4)              # output block (lane-padded), x2
    const_bytes = (dim_val * nqkv + nqkv + H * dim_val * dim_val) * in_isz * 2
    target_rows = max(8, min(4096, (vmem_limit // 2 - const_bytes) // per_row))

    Bb = _pick_block_batch(B, T, target_rows)
    rows = Bb * T                                  # rows per grid step
    x2 = x_in.reshape(B * T, dim_val)              # flattened slab layout

    mm_dtype = jnp.bfloat16 if use_bf16 else jnp.float32

    def kernel(x_ref, wqkv_ref, bqkv_ref, wfc_ref, o_ref):
        xb = x_ref[...]                                                  # (rows, dim_val)
        # single fused projection for Q/K/V of every head (f32 accumulation)
        qkv = jnp.dot(xb, wqkv_ref[...],
                      preferred_element_type=jnp.float32) + bqkv_ref[...]
        # cast ONCE for the attention-matmul operands (bf16 on MXU, f32 acc);
        # softmax itself stays f32.
        qkv_mm = qkv.astype(mm_dtype)
        q = qkv_mm[:, :nq].reshape(Bb, T, nq)
        k = qkv_mm[:, nq:2 * nq].reshape(Bb, T, nq)
        v = qkv_mm[:, 2 * nq:].reshape(Bb, T, H * dim_val)

        acc = jnp.zeros((rows, dim_val), jnp.float32)                    # fc accumulator
        for h in range(H):                                               # static unroll
            qh = q[:, :, h * dim_attn:(h + 1) * dim_attn]
            kh = k[:, :, h * dim_attn:(h + 1) * dim_attn]
            vh = v[:, :, h * dim_val:(h + 1) * dim_val]
            # batched q . k^T via dot_general (contract trailing dims, no transpose)
            s = jnp.einsum("bqd,bkd->bqk", qh, kh,
                           preferred_element_type=jnp.float32)           # (Bb, T, T) f32
            m = jnp.max(s, axis=-1, keepdims=True)
            e = jnp.exp(s - m)
            denom = jnp.sum(e, axis=-1, keepdims=True)
            p = e * pl.reciprocal(denom, approx=False)                   # exact EUP recip (free)
            oh = jnp.einsum("bqk,bkd->bqd", p.astype(mm_dtype), vh,
                            preferred_element_type=jnp.float32)          # (Bb, T, dim_val) f32
            # per-head fc accumulation (replaces lane-offset concatenate + big fc)
            wfc_h = wfc_ref[h * dim_val:(h + 1) * dim_val, :]            # static sublane slice
            acc = acc + jnp.dot(oh.reshape(rows, dim_val).astype(wfc_ref.dtype),
                                wfc_h, preferred_element_type=jnp.float32)

        o_ref[...] = acc.astype(o_ref.dtype)

    out2 = pl.pallas_call(
        kernel,
        out_shape=jax.ShapeDtypeStruct((B * T, dim_val), out_dtype),
        grid_spec=pltpu.PrefetchScalarGridSpec(
            num_scalar_prefetch=0,
            grid=(B // Bb,),
            in_specs=[
                pl.BlockSpec((rows, dim_val), lambda i: (i, 0)),          # x slab
                pl.BlockSpec((dim_val, nqkv), lambda i: (0, 0)),          # fused Wqkv (constant)
                pl.BlockSpec((1, nqkv), lambda i: (0, 0)),                # fused bqkv (constant)
                pl.BlockSpec((H * dim_val, dim_val), lambda i: (0, 0)),   # Wfc (per-head blocks)
            ],
            out_specs=pl.BlockSpec((rows, dim_val), lambda i: (i, 0)),
        ),
        compiler_params=pltpu.CompilerParams(
            dimension_semantics=("parallel",),      # shard batch slabs across v7x TCs
            vmem_limit_bytes=vmem_limit,
        ),
    )(x2, w_qkv, b_qkv, w_fc)

    return out2.reshape(B, T, dim_val)


def init_params(key, dim_val, dim_attn, n_heads):
    """Deterministic synthetic params (PyTorch nn.Linear-style uniform init), weights pre-transposed (in, out)."""
    keys = jax.random.split(key, 6 * n_heads + 1)
    bound = 1.0 / math.sqrt(dim_val)
    heads = []
    for h in range(n_heads):
        kq, kbq, kk, kbk, kv, kbv = keys[6 * h:6 * h + 6]
        heads.append({
            "wq": jax.random.uniform(kq, (dim_val, dim_attn), jnp.float32, -bound, bound),
            "bq": jax.random.uniform(kbq, (1, dim_attn), jnp.float32, -bound, bound),
            "wk": jax.random.uniform(kk, (dim_val, dim_attn), jnp.float32, -bound, bound),
            "bk": jax.random.uniform(kbk, (1, dim_attn), jnp.float32, -bound, bound),
            "wv": jax.random.uniform(kv, (dim_val, dim_val), jnp.float32, -bound, bound),
            "bv": jax.random.uniform(kbv, (1, dim_val), jnp.float32, -bound, bound),
        })
    bound_fc = 1.0 / math.sqrt(n_heads * dim_val)
    w_fc = jax.random.uniform(keys[-1], (n_heads * dim_val, dim_val),
                              jnp.float32, -bound_fc, bound_fc)
    return {"heads": heads, "w_fc": w_fc}


def reference(x, params):
    """Pure-JAX reference matching the PyTorch forward exactly (including stack/flatten order)."""
    outs = []
    for hp in params["heads"]:
        q = x @ hp["wq"] + hp["bq"]
        k = x @ hp["wk"] + hp["bk"]
        v = x @ hp["wv"] + hp["bv"]
        s = jnp.einsum("btd,bsd->bts", q, k) / jnp.sqrt(jnp.float32(q.shape[-1]))
        a = jax.nn.softmax(s, axis=-1)
        outs.append(jnp.einsum("bts,bsd->btd", a, v))
    a = jnp.stack(outs, axis=-1)                       # (B, T, dim_val, H)
    a = a.reshape(a.shape[0], a.shape[1], -1)          # torch .flatten(start_dim=2)
    return a @ params["w_fc"]                          # fc, no bias


if __name__ == "__main__":
    B, T = 2, 8
    dim_val, dim_attn, n_heads = 32, 16, 4

    key = jax.random.PRNGKey(0)
    k_x, k_p = jax.random.split(key)
    x = jax.random.normal(k_x, (B, T, dim_val), dtype=jnp.float32)
    params = init_params(k_p, dim_val, dim_attn, n_heads)

    ref = reference(x, params)

    # f32 path (exact softmax reciprocal; tolerance covers default matmul precision)
    out = multi_head_time_step_attention(x, params, use_bf16=False)
    out = jax.block_until_ready(out)
    assert out.shape == (B, T, dim_val)
    assert jnp.allclose(out, ref, atol=2e-3, rtol=2e-3), "f32 kernel mismatch vs reference"

    # bf16-operand MXU path (projection + score + PV matmuls in bf16, f32 accumulation)
    out_bf16 = multi_head_time_step_attention(x, params, use_bf16=True)
    out_bf16 = jax.block_until_ready(out_bf16)
    assert jnp.allclose(out_bf16, ref, atol=5e-2, rtol=5e-2), "bf16 kernel mismatch vs reference"

    print("KERNEL_OK")
</pallas_src>

<mosaic_0001>
module attributes {stable_mosaic.version = 11 : i64} {
  func.func @kernel(%arg0: i32, %arg1: memref<8x32xf32, #tpu.memory_space<vmem>>, %arg2: memref<32x256xf32, #tpu.memory_space<vmem>>, %arg3: memref<1x256xf32, #tpu.memory_space<vmem>>, %arg4: memref<128x32xf32, #tpu.memory_space<vmem>>, %arg5: memref<8x32xf32, #tpu.memory_space<vmem>>) attributes {dimension_semantics = [#tpu.dimension_semantics<parallel>], iteration_bounds = array<i64: 2>, scalar_prefetch = 0 : i64, scratch_operands = 0 : i64, tpu.core_type = #tpu.core_type<tc>, window_params = [{transform_indices = @transform_0, window_bounds = array<i64: 8, 32>}, {pipeline_mode = #tpu.pipeline_mode<synchronous>, transform_indices = @transform_1, window_bounds = array<i64: 32, 256>}, {pipeline_mode = #tpu.pipeline_mode<synchronous>, transform_indices = @transform_2, window_bounds = array<i64: 1, 256>}, {pipeline_mode = #tpu.pipeline_mode<synchronous>, transform_indices = @transform_3, window_bounds = array<i64: 128, 32>}, {transform_indices = @transform_4, window_bounds = array<i64: 8, 32>}]} {
    %c0 = arith.constant 0 : index
    %c0_0 = arith.constant 0 : index
    %0 = vector.load %arg1[%c0, %c0_0] : memref<8x32xf32, #tpu.memory_space<vmem>>, vector<8x32xf32>
    %c0_1 = arith.constant 0 : index
    %c0_2 = arith.constant 0 : index
    %1 = vector.load %arg2[%c0_1, %c0_2] : memref<32x256xf32, #tpu.memory_space<vmem>>, vector<32x256xf32>
    %cst = arith.constant dense<0.000000e+00> : vector<8x256xf32>
    %2 = tpu.matmul %0, %1, %cst {dimension_numbers = #tpu.dot_dimension_numbers<[1], [0], [0], [1], [0, 0, 1, 1], [], []>} : vector<8x32xf32>, vector<32x256xf32>, vector<8x256xf32> -> vector<8x256xf32>
    %c0_3 = arith.constant 0 : index
    %c0_4 = arith.constant 0 : index
    %3 = vector.load %arg3[%c0_3, %c0_4] : memref<1x256xf32, #tpu.memory_space<vmem>>, vector<1x256xf32>
    %4 = vector.broadcast %3 : vector<1x256xf32> to vector<8x256xf32>
    %5 = arith.addf %2, %4 : vector<8x256xf32>
    %6 = vector.extract_strided_slice %5 {offsets = [0, 0], sizes = [8, 64], strides = [1, 1]} : vector<8x256xf32> to vector<8x64xf32>
    %7 = vector.shape_cast %6 : vector<8x64xf32> to vector<1x8x64xf32>
    %8 = vector.extract_strided_slice %5 {offsets = [0, 64], sizes = [8, 64], strides = [1, 1]} : vector<8x256xf32> to vector<8x64xf32>
    %9 = vector.shape_cast %8 : vector<8x64xf32> to vector<1x8x64xf32>
    %10 = vector.extract_strided_slice %5 {offsets = [0, 128], sizes = [8, 128], strides = [1, 1]} : vector<8x256xf32> to vector<8x128xf32>
    %11 = vector.shape_cast %10 : vector<8x128xf32> to vector<1x8x128xf32>
    %cst_5 = arith.constant 0.000000e+00 : f32
    %12 = vector.broadcast %cst_5 : f32 to vector<8x32xf32>
    %13 = vector.extract_strided_slice %7 {offsets = [0, 0, 0], sizes = [1, 8, 16], strides = [1, 1, 1]} : vector<1x8x64xf32> to vector<1x8x16xf32>
    %14 = vector.extract_strided_slice %9 {offsets = [0, 0, 0], sizes = [1, 8, 16], strides = [1, 1, 1]} : vector<1x8x64xf32> to vector<1x8x16xf32>
    %15 = vector.extract_strided_slice %11 {offsets = [0, 0, 0], sizes = [1, 8, 32], strides = [1, 1, 1]} : vector<1x8x128xf32> to vector<1x8x32xf32>
    "tpu.trace_start"() <{level = 10 : i32, message = "bqd,bkd->bqk"}> : () -> ()
    %cst_6 = arith.constant dense<0.000000e+00> : vector<1x8x8xf32>
    %16 = tpu.matmul %13, %14, %cst_6 {dimension_numbers = #tpu.dot_dimension_numbers<[2], [2], [1], [1], [0, 0, 0, 1, 1, 1], [0], [0]>} : vector<1x8x16xf32>, vector<1x8x16xf32>, vector<1x8x8xf32> -> vector<1x8x8xf32>
    "tpu.trace_stop"() : () -> ()
    %cst_7 = arith.constant dense<0xFF800000> : vector<1x8xf32>
    %17 = vector.multi_reduction <maximumf>, %16, %cst_7 [2] : vector<1x8x8xf32> to vector<1x8xf32>
    %18 = vector.shape_cast %17 : vector<1x8xf32> to vector<1x8x1xf32>
    %19 = vector.broadcast %18 : vector<1x8x1xf32> to vector<1x8x8xf32>
    %20 = arith.subf %16, %19 : vector<1x8x8xf32>
    %21 = math.exp %20 : vector<1x8x8xf32>
    %cst_8 = arith.constant dense<0.000000e+00> : vector<1x8xf32>
    %22 = vector.multi_reduction <add>, %21, %cst_8 [2] : vector<1x8x8xf32> to vector<1x8xf32>
    %23 = vector.shape_cast %22 : vector<1x8xf32> to vector<1x8x1xf32>
    %24 = tpu.reciprocal %23 : vector<1x8x1xf32> -> vector<1x8x1xf32>
    %25 = vector.broadcast %24 : vector<1x8x1xf32> to vector<1x8x8xf32>
    %26 = arith.mulf %21, %25 : vector<1x8x8xf32>
    "tpu.trace_start"() <{level = 10 : i32, message = "bqk,bkd->bqd"}> : () -> ()
    %cst_9 = arith.constant dense<0.000000e+00> : vector<1x8x32xf32>
    %27 = tpu.matmul %26, %15, %cst_9 {dimension_numbers = #tpu.dot_dimension_numbers<[2], [1], [1], [2], [0, 0, 0, 1, 1, 2], [0], [0]>} : vector<1x8x8xf32>, vector<1x8x32xf32>, vector<1x8x32xf32> -> vector<1x8x32xf32>
    "tpu.trace_stop"() : () -> ()
    %c0_10 = arith.constant 0 : index
    %c0_11 = arith.constant 0 : index
    %28 = vector.load %arg4[%c0_10, %c0_11] : memref<128x32xf32, #tpu.memory_space<vmem>>, vector<32x32xf32>
    %29 = vector.shape_cast %27 : vector<1x8x32xf32> to vector<8x32xf32>
    %cst_12 = arith.constant dense<0.000000e+00> : vector<8x32xf32>
    %30 = tpu.matmul %29, %28, %cst_12 {dimension_numbers = #tpu.dot_dimension_numbers<[1], [0], [0], [1], [0, 0, 1, 1], [], []>} : vector<8x32xf32>, vector<32x32xf32>, vector<8x32xf32> -> vector<8x32xf32>
    %31 = arith.addf %12, %30 : vector<8x32xf32>
    %32 = vector.extract_strided_slice %7 {offsets = [0, 0, 16], sizes = [1, 8, 16], strides = [1, 1, 1]} : vector<1x8x64xf32> to vector<1x8x16xf32>
    %33 = vector.extract_strided_slice %9 {offsets = [0, 0, 16], sizes = [1, 8, 16], strides = [1, 1, 1]} : vector<1x8x64xf32> to vector<1x8x16xf32>
    %34 = vector.extract_strided_slice %11 {offsets = [0, 0, 32], sizes = [1, 8, 32], strides = [1, 1, 1]} : vector<1x8x128xf32> to vector<1x8x32xf32>
    "tpu.trace_start"() <{level = 10 : i32, message = "bqd,bkd->bqk"}> : () -> ()
    %cst_13 = arith.constant dense<0.000000e+00> : vector<1x8x8xf32>
    %35 = tpu.matmul %32, %33, %cst_13 {dimension_numbers = #tpu.dot_dimension_numbers<[2], [2], [1], [1], [0, 0, 0, 1, 1, 1], [0], [0]>} : vector<1x8x16xf32>, vector<1x8x16xf32>, vector<1x8x8xf32> -> vector<1x8x8xf32>
    "tpu.trace_stop"() : () -> ()
    %cst_14 = arith.constant dense<0xFF800000> : vector<1x8xf32>
    %36 = vector.multi_reduction <maximumf>, %35, %cst_14 [2] : vector<1x8x8xf32> to vector<1x8xf32>
    %37 = vector.shape_cast %36 : vector<1x8xf32> to vector<1x8x1xf32>
    %38 = vector.broadcast %37 : vector<1x8x1xf32> to vector<1x8x8xf32>
    %39 = arith.subf %35, %38 : vector<1x8x8xf32>
    %40 = math.exp %39 : vector<1x8x8xf32>
    %cst_15 = arith.constant dense<0.000000e+00> : vector<1x8xf32>
    %41 = vector.multi_reduction <add>, %40, %cst_15 [2] : vector<1x8x8xf32> to vector<1x8xf32>
    %42 = vector.shape_cast %41 : vector<1x8xf32> to vector<1x8x1xf32>
    %43 = tpu.reciprocal %42 : vector<1x8x1xf32> -> vector<1x8x1xf32>
    %44 = vector.broadcast %43 : vector<1x8x1xf32> to vector<1x8x8xf32>
    %45 = arith.mulf %40, %44 : vector<1x8x8xf32>
    "tpu.trace_start"() <{level = 10 : i32, message = "bqk,bkd->bqd"}> : () -> ()
    %cst_16 = arith.constant dense<0.000000e+00> : vector<1x8x32xf32>
    %46 = tpu.matmul %45, %34, %cst_16 {dimension_numbers = #tpu.dot_dimension_numbers<[2], [1], [1], [2], [0, 0, 0, 1, 1, 2], [0], [0]>} : vector<1x8x8xf32>, vector<1x8x32xf32>, vector<1x8x32xf32> -> vector<1x8x32xf32>
    "tpu.trace_stop"() : () -> ()
    %c32 = arith.constant 32 : index
    %c0_17 = arith.constant 0 : index
    %47 = vector.load %arg4[%c32, %c0_17] : memref<128x32xf32, #tpu.memory_space<vmem>>, vector<32x32xf32>
    %48 = vector.shape_cast %46 : vector<1x8x32xf32> to vector<8x32xf32>
    %cst_18 = arith.constant dense<0.000000e+00> : vector<8x32xf32>
    %49 = tpu.matmul %48, %47, %cst_18 {dimension_numbers = #tpu.dot_dimension_numbers<[1], [0], [0], [1], [0, 0, 1, 1], [], []>} : vector<8x32xf32>, vector<32x32xf32>, vector<8x32xf32> -> vector<8x32xf32>
    %50 = arith.addf %31, %49 : vector<8x32xf32>
    %51 = vector.extract_strided_slice %7 {offsets = [0, 0, 32], sizes = [1, 8, 16], strides = [1, 1, 1]} : vector<1x8x64xf32> to vector<1x8x16xf32>
    %52 = vector.extract_strided_slice %9 {offsets = [0, 0, 32], sizes = [1, 8, 16], strides = [1, 1, 1]} : vector<1x8x64xf32> to vector<1x8x16xf32>
    %53 = vector.extract_strided_slice %11 {offsets = [0, 0, 64], sizes = [1, 8, 32], strides = [1, 1, 1]} : vector<1x8x128xf32> to vector<1x8x32xf32>
    "tpu.trace_start"() <{level = 10 : i32, message = "bqd,bkd->bqk"}> : () -> ()
    %cst_19 = arith.constant dense<0.000000e+00> : vector<1x8x8xf32>
    %54 = tpu.matmul %51, %52, %cst_19 {dimension_numbers = #tpu.dot_dimension_numbers<[2], [2], [1], [1], [0, 0, 0, 1, 1, 1], [0], [0]>} : vector<1x8x16xf32>, vector<1x8x16xf32>, vector<1x8x8xf32> -> vector<1x8x8xf32>
    "tpu.trace_stop"() : () -> ()
    %cst_20 = arith.constant dense<0xFF800000> : vector<1x8xf32>
    %55 = vector.multi_reduction <maximumf>, %54, %cst_20 [2] : vector<1x8x8xf32> to vector<1x8xf32>
    %56 = vector.shape_cast %55 : vector<1x8xf32> to vector<1x8x1xf32>
    %57 = vector.broadcast %56 : vector<1x8x1xf32> to vector<1x8x8xf32>
    %58 = arith.subf %54, %57 : vector<1x8x8xf32>
    %59 = math.exp %58 : vector<1x8x8xf32>
    %cst_21 = arith.constant dense<0.000000e+00> : vector<1x8xf32>
    %60 = vector.multi_reduction <add>, %59, %cst_21 [2] : vector<1x8x8xf32> to vector<1x8xf32>
    %61 = vector.shape_cast %60 : vector<1x8xf32> to vector<1x8x1xf32>
    %62 = tpu.reciprocal %61 : vector<1x8x1xf32> -> vector<1x8x1xf32>
    %63 = vector.broadcast %62 : vector<1x8x1xf32> to vector<1x8x8xf32>
    %64 = arith.mulf %59, %63 : vector<1x8x8xf32>
    "tpu.trace_start"() <{level = 10 : i32, message = "bqk,bkd->bqd"}> : () -> ()
    %cst_22 = arith.constant dense<0.000000e+00> : vector<1x8x32xf32>
    %65 = tpu.matmul %64, %53, %cst_22 {dimension_numbers = #tpu.dot_dimension_numbers<[2], [1], [1], [2], [0, 0, 0, 1, 1, 2], [0], [0]>} : vector<1x8x8xf32>, vector<1x8x32xf32>, vector<1x8x32xf32> -> vector<1x8x32xf32>
    "tpu.trace_stop"() : () -> ()
    %c64 = arith.constant 64 : index
    %c0_23 = arith.constant 0 : index
    %66 = vector.load %arg4[%c64, %c0_23] : memref<128x32xf32, #tpu.memory_space<vmem>>, vector<32x32xf32>
    %67 = vector.shape_cast %65 : vector<1x8x32xf32> to vector<8x32xf32>
    %cst_24 = arith.constant dense<0.000000e+00> : vector<8x32xf32>
    %68 = tpu.matmul %67, %66, %cst_24 {dimension_numbers = #tpu.dot_dimension_numbers<[1], [0], [0], [1], [0, 0, 1, 1], [], []>} : vector<8x32xf32>, vector<32x32xf32>, vector<8x32xf32> -> vector<8x32xf32>
    %69 = arith.addf %50, %68 : vector<8x32xf32>
    %70 = vector.extract_strided_slice %7 {offsets = [0, 0, 48], sizes = [1, 8, 16], strides = [1, 1, 1]} : vector<1x8x64xf32> to vector<1x8x16xf32>
    %71 = vector.extract_strided_slice %9 {offsets = [0, 0, 48], sizes = [1, 8, 16], strides = [1, 1, 1]} : vector<1x8x64xf32> to vector<1x8x16xf32>
    %72 = vector.extract_strided_slice %11 {offsets = [0, 0, 96], sizes = [1, 8, 32], strides = [1, 1, 1]} : vector<1x8x128xf32> to vector<1x8x32xf32>
    "tpu.trace_start"() <{level = 10 : i32, message = "bqd,bkd->bqk"}> : () -> ()
    %cst_25 = arith.constant dense<0.000000e+00> : vector<1x8x8xf32>
    %73 = tpu.matmul %70, %71, %cst_25 {dimension_numbers = #tpu.dot_dimension_numbers<[2], [2], [1], [1], [0, 0, 0, 1, 1, 1], [0], [0]>} : vector<1x8x16xf32>, vector<1x8x16xf32>, vector<1x8x8xf32> -> vector<1x8x8xf32>
    "tpu.trace_stop"() : () -> ()
    %cst_26 = arith.constant dense<0xFF800000> : vector<1x8xf32>
    %74 = vector.multi_reduction <maximumf>, %73, %cst_26 [2] : vector<1x8x8xf32> to vector<1x8xf32>
    %75 = vector.shape_cast %74 : vector<1x8xf32> to vector<1x8x1xf32>
    %76 = vector.broadcast %75 : vector<1x8x1xf32> to vector<1x8x8xf32>
    %77 = arith.subf %73, %76 : vector<1x8x8xf32>
    %78 = math.exp %77 : vector<1x8x8xf32>
    %cst_27 = arith.constant dense<0.000000e+00> : vector<1x8xf32>
    %79 = vector.multi_reduction <add>, %78, %cst_27 [2] : vector<1x8x8xf32> to vector<1x8xf32>
    %80 = vector.shape_cast %79 : vector<1x8xf32> to vector<1x8x1xf32>
    %81 = tpu.reciprocal %80 : vector<1x8x1xf32> -> vector<1x8x1xf32>
    %82 = vector.broadcast %81 : vector<1x8x1xf32> to vector<1x8x8xf32>
    %83 = arith.mulf %78, %82 : vector<1x8x8xf32>
    "tpu.trace_start"() <{level = 10 : i32, message = "bqk,bkd->bqd"}> : () -> ()
    %cst_28 = arith.constant dense<0.000000e+00> : vector<1x8x32xf32>
    %84 = tpu.matmul %83, %72, %cst_28 {dimension_numbers = #tpu.dot_dimension_numbers<[2], [1], [1], [2], [0, 0, 0, 1, 1, 2], [0], [0]>} : vector<1x8x8xf32>, vector<1x8x32xf32>, vector<1x8x32xf32> -> vector<1x8x32xf32>
    "tpu.trace_stop"() : () -> ()
    %c96 = arith.constant 96 : index
    %c0_29 = arith.constant 0 : index
    %85 = vector.load %arg4[%c96, %c0_29] : memref<128x32xf32, #tpu.memory_space<vmem>>, vector<32x32xf32>
    %86 = vector.shape_cast %84 : vector<1x8x32xf32> to vector<8x32xf32>
    %cst_30 = arith.constant dense<0.000000e+00> : vector<8x32xf32>
    %87 = tpu.matmul %86, %85, %cst_30 {dimension_numbers = #tpu.dot_dimension_numbers<[1], [0], [0], [1], [0, 0, 1, 1], [], []>} : vector<8x32xf32>, vector<32x32xf32>, vector<8x32xf32> -> vector<8x32xf32>
    %88 = arith.addf %69, %87 : vector<8x32xf32>
    %c0_31 = arith.constant 0 : index
    %c0_32 = arith.constant 0 : index
    %89 = vector.load %arg5[%c0_31, %c0_32] : memref<8x32xf32, #tpu.memory_space<vmem>>, vector<8x32xf32>
    tpu.vector_store %arg5[%c0_31, %c0_32], %88 {strides = array<i32>} : memref<8x32xf32, #tpu.memory_space<vmem>>, vector<8x32xf32>,
    return
  }
  func.func @transform_0(%arg0: i32) -> (i32, i32) {
    %c0_i32 = arith.constant 0 : i32
    %c0_i32_0 = arith.constant 0 : i32
    return %arg0, %c0_i32 : i32, i32
  }
  func.func @transform_1(%arg0: i32) -> (i32, i32) {
    %c0_i32 = arith.constant 0 : i32
    %c0_i32_0 = arith.constant 0 : i32
    %c0_i32_1 = arith.constant 0 : i32
    return %c0_i32, %c0_i32_0 : i32, i32
  }
  func.func @transform_2(%arg0: i32) -> (i32, i32) {
    %c0_i32 = arith.constant 0 : i32
    %c0_i32_0 = arith.constant 0 : i32
    %c0_i32_1 = arith.constant 0 : i32
    return %c0_i32, %c0_i32_0 : i32, i32
  }
  func.func @transform_3(%arg0: i32) -> (i32, i32) {
    %c0_i32 = arith.constant 0 : i32
    %c0_i32_0 = arith.constant 0 : i32
    %c0_i32_1 = arith.constant 0 : i32
    return %c0_i32, %c0_i32_0 : i32, i32
  }
  func.func @transform_4(%arg0: i32) -> (i32, i32) {
    %c0_i32 = arith.constant 0 : i32
    %c0_i32_0 = arith.constant 0 : i32
    return %arg0, %c0_i32 : i32, i32
  }
}

</mosaic_0001>

<llo_original>
// kernel: tpu_custom_call.1
$region0: #{tpu_custom_call.1}
  #allocation0 [shape = 'u32[]', space=smem, size = 0x4, offset = 0x4, fixed_abs, tag = 'smem constant byte address 0x4 - core index']
  #allocation1 [shape = 'u32[144,128]{1,0:T(1,128)}', space=vmem, size = 0x12000, scoped, tag = 'internal scratch']
  %s0 = inlined_call_operand.vmem [shape: f32[16,32], index: 0, kind: input, shape index: {}]
  %s1 = inlined_call_operand.vmem [shape: f32[32,256], index: 1, kind: input, shape index: {}]
  %s2 = inlined_call_operand.vmem [shape: f32[1,256], index: 2, kind: input, shape index: {}]
  %s3 = inlined_call_operand.vmem [shape: f32[128,32], index: 3, kind: input, shape index: {}]
  %s4 = inlined_call_operand.hbm [shape: f32[16,32], index: 4, kind: output, shape index: {}]
  %s5 = sld [smem:[#allocation0]]
  $region49: #{tpu_custom_call.1} parent=0
    _
  %s7 = ssub.s32 1, %s5
  %s8 = scalar_select 0, %s7, %s5
  $region1: #{tpu_custom_call.1} parent=0
    #allocation2 [shape = 'u8[8192]{0}', space=vmem, size = 0x2000, scoped, tag = 'output window, operand 0']
    #allocation3 [shape = 's32[2]{0}', space=sflag, size = 0x8, scoped, tag = 'scoped memory for tpu_custom_call.1']
    %9 = vsyncpa [#allocation3], 0
    %s10 = scalar_lea.sflag [#allocation3], 1
    %11 = vsyncpa %s10, 0
    loop: start=0, step=1, limit=4
    $region2: #{tpu_custom_call.1} parent=1 // loop_pre_header
      _
    $region3: #{tpu_custom_call.1} parent=1 // loop_header
      %s13 = sphi 0, %s17
      %p14 = scmp.ge.s32.totalorder %s13, 4
      %s23 = sphi 0, %s25
      %s26 = sphi 0, %s23
      %s27 = sphi 0, %s26
      %s43 = sphi 0, %s27
      %s47 = sphi 0, %s47
      %s49 = sphi 0, %s47
      %s50 = sphi 0, %s49
      %s64 = sphi 0, %s50
      %s68 = sphi 0, %s68
      %s70 = sphi 0, %s68
      %s71 = sphi 0, %s70
      %s85 = sphi 0, %s71
      %s89 = sphi 0, %s89
      %s91 = sphi 0, %s89
      %s92 = sphi 0, %s91
      %s106 = sphi 0, %s92
      %s112 = sphi 0, %s114
      %s115 = sphi 0, %s112
      %s116 = sphi 0, %s115
      %s132 = sphi 0, %s116
    $region4: #{tpu_custom_call.1} parent=1 // loop_header_branch
      %16 = sbr.rel (%p14) target = $region8
    $region5: #{tpu_custom_call.1} parent=1 // loop_body
      %s18 = ssub.s32 %s13, 1
      %s19 = ssub.s32 %s13, 2
      %s20 = sadd.s32 %s13, 1
      %s21 = ssub.s32 %s13, %s20
      %p22 = scmp.eq.s32.totalorder %s21, 0
      %s24 = sadd.s32 %s23, 1
      %s25 = scalar_select %p22, %s23, %s24
      %p28 = pneg %p22
      %p29 = scmp.eq.s32.totalorder %s13, 1
      %p30 = por %p28, %p29
      %p31 = scmp.ne.s32.totalorder %s23, %s26
      %p32 = scmp.eq.s32.totalorder %s13, 0
      %p33 = por %p31, %p32
      %p34 = scmp.ne.s32.totalorder %s23, %s26
      %p35 = scmp.eq.s32.totalorder %s18, 1
      %p36 = por %p34, %p35
      %p37 = scmp.ne.s32.totalorder %s26, %s27
      %p38 = scmp.eq.s32.totalorder %s18, 0
      %p39 = por %p37, %p38
      %p40 = scmp.ne.s32.totalorder %s26, %s27
      %p41 = scmp.eq.s32.totalorder %s19, 1
      %p42 = por %p40, %p41
      %p44 = scmp.ne.s32.totalorder %s27, %s43
      %p45 = scmp.eq.s32.totalorder %s19, 0
      %p46 = por %p44, %p45
      %s48 = sadd.s32 %s47, 1
      %p51 = scmp.eq.s32.totalorder %s13, 1
      %p52 = scmp.ne.s32.totalorder %s47, %s49
      %p53 = scmp.eq.s32.totalorder %s13, 0
      %p54 = por %p52, %p53
      %p55 = scmp.ne.s32.totalorder %s47, %s49
      %p56 = scmp.eq.s32.totalorder %s18, 1
      %p57 = por %p55, %p56
      %p58 = scmp.ne.s32.totalorder %s49, %s50
      %p59 = scmp.eq.s32.totalorder %s18, 0
      %p60 = por %p58, %p59
      %p61 = scmp.ne.s32.totalorder %s49, %s50
      %p62 = scmp.eq.s32.totalorder %s19, 1
      %p63 = por %p61, %p62
      %p65 = scmp.ne.s32.totalorder %s50, %s64
      %p66 = scmp.eq.s32.totalorder %s19, 0
      %p67 = por %p65, %p66
      %s69 = sadd.s32 %s68, 1
      %p72 = scmp.eq.s32.totalorder %s13, 1
      %p73 = scmp.ne.s32.totalorder %s68, %s70
      %p74 = scmp.eq.s32.totalorder %s13, 0
      %p75 = por %p73, %p74
      %p76 = scmp.ne.s32.totalorder %s68, %s70
      %p77 = scmp.eq.s32.totalorder %s18, 1
      %p78 = por %p76, %p77
      %p79 = scmp.ne.s32.totalorder %s70, %s71
      %p80 = scmp.eq.s32.totalorder %s18, 0
      %p81 = por %p79, %p80
      %p82 = scmp.ne.s32.totalorder %s70, %s71
      %p83 = scmp.eq.s32.totalorder %s19, 1
      %p84 = por %p82, %p83
      %p86 = scmp.ne.s32.totalorder %s71, %s85
      %p87 = scmp.eq.s32.totalorder %s19, 0
      %p88 = por %p86, %p87
      %s90 = sadd.s32 %s89, 1
      %p93 = scmp.eq.s32.totalorder %s13, 1
      %p94 = scmp.ne.s32.totalorder %s89, %s91
      %p95 = scmp.eq.s32.totalorder %s13, 0
      %p96 = por %p94, %p95
      %p97 = scmp.ne.s32.totalorder %s89, %s91
      %p98 = scmp.eq.s32.totalorder %s18, 1
      %p99 = por %p97, %p98
      %p100 = scmp.ne.s32.totalorder %s91, %s92
      %p101 = scmp.eq.s32.totalorder %s18, 0
      %p102 = por %p100, %p101
      %p103 = scmp.ne.s32.totalorder %s91, %s92
      %p104 = scmp.eq.s32.totalorder %s19, 1
      %p105 = por %p103, %p104
      %p107 = scmp.ne.s32.totalorder %s92, %s106
      %p108 = scmp.eq.s32.totalorder %s19, 0
      %p109 = por %p107, %p108
      %s110 = ssub.s32 %s13, %s20
      %p111 = scmp.eq.s32.totalorder %s110, 0
      %s113 = sadd.s32 %s112, 1
      %s114 = scalar_select %p111, %s112, %s113
      %p117 = pneg %p111
      %p118 = scmp.eq.s32.totalorder %s13, 1
      %p119 = por %p117, %p118
      %p120 = scmp.ne.s32.totalorder %s112, %s115
      %p121 = scmp.eq.s32.totalorder %s13, 0
      %p122 = por %p120, %p121
      %p123 = scmp.ne.s32.totalorder %s112, %s115
      %p124 = scmp.eq.s32.totalorder %s18, 1
      %p125 = por %p123, %p124
      %p126 = scmp.ne.s32.totalorder %s115, %s116
      %p127 = scmp.eq.s32.totalorder %s18, 0
      %p128 = por %p126, %p127
      %p129 = scmp.ne.s32.totalorder %s115, %s116
      %p130 = scmp.eq.s32.totalorder %s19, 1
      %p131 = por %p129, %p130
      %p133 = scmp.ne.s32.totalorder %s116, %s132
      %p134 = scmp.eq.s32.totalorder %s19, 0
      %p135 = por %p133, %p134
      %p136 = scmp.le.s32.totalorder 1, %s13
      %p137 = scmp.lt.s32.totalorder %s13, 3
      %p138 = pnand %p136, %p137
      %p139 = pneg %p138
      // Predicated region
      $region9: #{tpu_custom_call.1} parent=5 // pred_check
        _
      $region10: #{tpu_custom_call.1} parent=5 // pred_check_branch
        %141 = sbr.rel (%p138) target = $region12
      $region11: #{tpu_custom_call.1} parent=5 // pred_region
        %s142 = ssub.s32 %s13, 1
        // Predicated region
        $region13: #{tpu_custom_call.1} parent=11 // pred_check
          %p143 = pneg %p60
        $region14: #{tpu_custom_call.1} parent=11 // pred_check_branch
          %145 = sbr.rel (%p143) target = $region16
        $region15: #{tpu_custom_call.1} parent=11 // pred_region
          _
        $region16: #{tpu_custom_call.1} parent=11 // pred_fallthru
          _
        // Predicated region
        $region17: #{tpu_custom_call.1} parent=11 // pred_check
          %p146 = pneg %p81
        $region18: #{tpu_custom_call.1} parent=11 // pred_check_branch
          %148 = sbr.rel (%p146) target = $region20
        $region19: #{tpu_custom_call.1} parent=11 // pred_region
          _
        $region20: #{tpu_custom_call.1} parent=11 // pred_fallthru
          _
        // Predicated region
        $region21: #{tpu_custom_call.1} parent=11 // pred_check
          %p149 = pneg %p102
        $region22: #{tpu_custom_call.1} parent=11 // pred_check_branch
          %151 = sbr.rel (%p149) target = $region24
        $region23: #{tpu_custom_call.1} parent=11 // pred_region
          _
        $region24: #{tpu_custom_call.1} parent=11 // pred_fallthru
          _
      $region12: #{tpu_custom_call.1} parent=5 // pred_fallthru
        _
      %p152 = scmp.lt.s32.totalorder %s13, 2
      // Predicated region
      $region25: #{tpu_custom_call.1} parent=5 // pred_check
        %p153 = pneg %p152
      $region26: #{tpu_custom_call.1} parent=5 // pred_check_branch
        %155 = sbr.rel (%p153) target = $region28
      $region27: #{tpu_custom_call.1} parent=5 // pred_region
        // Predicated region
        $region29: #{tpu_custom_call.1} parent=27 // pred_check
          %p156 = pneg %p33
        $region30: #{tpu_custom_call.1} parent=27 // pred_check_branch
          %158 = sbr.rel (%p156) target = $region32
        $region31: #{tpu_custom_call.1} parent=27 // pred_region
          %p159 = scmp.lt.s32.totalorder %s13, 1
          %s160 = scalar_select %p159, %s13, 1
          %s161 = smul.addr %s160, 8
          %s162 = scalar_lea.vmem %s0, %s161
        $region32: #{tpu_custom_call.1} parent=27 // pred_fallthru
          _
      $region28: #{tpu_custom_call.1} parent=5 // pred_fallthru
        _
      %p163 = scmp.le.s32.totalorder 1, %s13
      %p164 = scmp.lt.s32.totalorder %s13, 3
      %p165 = pnand %p163, %p164
      %p166 = pneg %p165
      // Predicated region
      $region33: #{tpu_custom_call.1} parent=5 // pred_check
        _
      $region34: #{tpu_custom_call.1} parent=5 // pred_check_branch
        %168 = sbr.rel (%p165) target = $region36
      $region35: #{tpu_custom_call.1} parent=5 // pred_region
        %s169 = ssub.s32 %s13, 1
        %p170 = scmp.lt.s32.totalorder %s18, 1
        %s171 = scalar_select %p170, %s18, 1
        %s172 = smul.addr %s171, 8
        %s173 = scalar_lea.vmem %s0, %s172
        %p174 = pneg %p39
        %p175 = pneg %p36
        %p176 = pneg %p60
        %p177 = pneg %p57
        %p178 = pneg %p81
        %p179 = pneg %p78
        %p180 = pneg %p102
        %p181 = pneg %p99
        %p182 = pneg %p128
        %p183 = pneg %p125
        %s184 = sand.u32 %s115, 1
        %s185 = scalar_lea.sflag [#allocation3], %s184
        %s186 = sand.u32 %s115, 1
        %s187 = smul.addr %s186, 8
        %s188 = scalar_lea.vmem [#allocation2], %s187
        %p189 = scmp.lt.s32.totalorder %s18, 1
        %s190 = scalar_select %p189, %s18, 1
        %s191 = smul.addr %s190, 8
        %s192 = scalar_lea.vmem %s0, %s191
        %v193 = vld [vmem:[%s192] sm:$0xff]
        %v194 = vld [vmem:[%s1] sm:$0xff]
        %v195 = vld [vmem:[%s1 + $0x8] sm:$0xff]
        %v196 = vld [vmem:[%s1 + $0x10] sm:$0xff]
        %v197 = vld [vmem:[%s1 + $0x18] sm:$0xff]
        %v198 = vld [vmem:[%s1 + $0x20] sm:$0xff]
        %v199 = vld [vmem:[%s1 + $0x28] sm:$0xff]
        %v200 = vld [vmem:[%s1 + $0x30] sm:$0xff]
        %v201 = vld [vmem:[%s1 + $0x38] sm:$0xff]
        %v202 = vld [vmem:[%s2] sm:$0x3]
        %v204 = vlaneseq
        %v205 = vshrl.u32 %v204, 7
        %v206 = vsub.s32 0, %v205
        %v207 = vrot.slane %v202, %v206
        %v208 = vlaneseq
        %v209 = vshrl.u32 %v208, 7
        %v210 = vsub.s32 1, %v209
        %v211 = vrot.slane %v202, %v210
        %vm214 = vcmask 261120
        %v216 = vsel %vm214, %v193, 0
        %218 = vmatprep.subr.mxu0 %v195
        %219 = vmatpush1.msra.mxu0 %v194
        %220 = vmatprep.subr.mxu0 %v197
        %221 = vmatpush1.msra.mxu0 %v196
        %222 = vmatprep.subr.mxu0 %v199
        %223 = vmatpush1.msra.mxu0 %v198
        %224 = vmatprep.subr.mxu0 %v201
        %225 = vmatpush1.msra.mxu0 %v200
        %226 = vmatprep.subr.mxu0 0.0
        %227 = vmatpush1.msra.mxu0 0.0
        %228 = vmatprep.subr.mxu0 0.0
        %229 = vmatpush1.msra.mxu0 0.0
        %230 = vmatprep.subr.mxu0 0.0
        %231 = vmatpush1.msra.mxu0 0.0
        %232 = vmatprep.subr.mxu0 0.0
        %233 = vmatpush1.msra.mxu0 0.0
        %234 = vmatprep.subr.mxu0 0.0
        %235 = vmatpush1.msra.mxu0 0.0
        %236 = vmatprep.subr.mxu0 0.0
        %237 = vmatpush1.msra.mxu0 0.0
        %238 = vmatprep.subr.mxu0 0.0
        %239 = vmatpush1.msra.mxu0 0.0
        %240 = vmatprep.subr.mxu0 0.0
        %241 = vmatpush1.msra.mxu0 0.0
        %242 = vmatprep.subr.mxu0 0.0
        %243 = vmatpush1.msra.mxu0 0.0
        %244 = vmatprep.subr.mxu0 0.0
        %245 = vmatpush1.msra.mxu0 0.0
        %246 = vmatprep.subr.mxu0 0.0
        %247 = vmatpush1.msra.mxu0 0.0
        %248 = vmatprep.subr.mxu0 0.0
        %249 = vmatpush1.msra.mxu0 0.0
        %250 = vmatprep.subr.mxu0 0.0
        %251 = vmatpush1.msra.mxu0 0.0
        %252 = vmatprep.subr.mxu0 0.0
        %253 = vmatpush1.msra.mxu0 0.0
        %254 = vmatprep.subr.mxu0 0.0
        %255 = vmatpush1.msra.mxu0 0.0
        %256 = vmatprep.subr.mxu0 0.0
        %257 = vmatpush1.msra.mxu0 0.0
        %258 = vmatprep.subr.mxu0 0.0
        %259 = vmatpush1.msra.mxu0 0.0
        %260 = vmatprep.subr.mxu0 0.0
        %261 = vmatpush1.msra.mxu0 0.0
        %262 = vmatprep.subr.mxu0 0.0
        %263 = vmatpush1.msra.mxu0 0.0
        %264 = vmatprep.subr.mxu0 0.0
        %265 = vmatpush1.msra.mxu0 0.0
        %266 = vmatprep.subr.mxu0 0.0
        %267 = vmatpush1.msra.mxu0 0.0
        %268 = vmatprep.subr.mxu0 0.0
        %269 = vmatpush1.msra.mxu0 0.0
        %270 = vmatprep.subr.mxu0 0.0
        %271 = vmatpush1.msra.mxu0 0.0
        %272 = vmatprep.subr.mxu0 0.0
        %273 = vmatpush1.msra.mxu0 0.0
        %274 = vmatprep.subr.mxu0 0.0
        %275 = vmatpush1.msra.mxu0 0.0
        %276 = vmatprep.subr.mxu0 0.0
        %277 = vmatpush1.msra.mxu0 0.0
        %278 = vmatprep.subr.mxu0 0.0
        %279 = vmatpush1.msra.mxu0 0.0
        %280 = vmatprep.subr.mxu0 0.0
        %281 = vmatpush1.msra.mxu0 0.0
        %282 = vmatprep.mubr.f32.mxu0 0.0
        %283 = vmatmul.mubr.f32.gmra.mrb[0].mxu0 %v216
        %v284 = vpop.f32.mrb[0].mxu0
        %v285 = vadd.f32 %v207, %v284
        %v286 = vpop.f32.mrb[0].mxu0
        %v287 = vadd.f32 %v211, %v286
        %288 = vdwg.mxu0
        %290 = vrot.lane.b32.xlu0 %v285, 64
        %v291 = vpop.permute.xlu0 %290
        %vm292 = vcmask 130048
        %v293 = vsel %vm292, %v285, 0
        %v295 = vsel %vm292, %v291, 0
        %297 = vmatprep.subr.mxu0 0.0
        %298 = vmatpush1.xpose.msra.mxu0 %v295
        %299 = vmatprep.subr.mxu0 0.0
        %300 = vmatpush1.xpose.msra.mxu0 0.0
        %301 = vmatprep.subr.mxu0 0.0
        %302 = vmatpush1.xpose.msra.mxu0 0.0
        %303 = vmatprep.subr.mxu0 0.0
        %304 = vmatpush1.xpose.msra.mxu0 0.0
        %305 = vmatprep.subr.mxu0 0.0
        %306 = vmatpush1.xpose.msra.mxu0 0.0
        %307 = vmatprep.subr.mxu0 0.0
        %308 = vmatpush1.xpose.msra.mxu0 0.0
        %309 = vmatprep.subr.mxu0 0.0
        %310 = vmatpush1.xpose.msra.mxu0 0.0
        %311 = vmatprep.subr.mxu0 0.0
        %312 = vmatpush1.xpose.msra.mxu0 0.0
        %313 = vmatprep.subr.mxu0 0.0
        %314 = vmatpush1.xpose.msra.mxu0 0.0
        %315 = vmatprep.subr.mxu0 0.0
        %316 = vmatpush1.xpose.msra.mxu0 0.0
        %317 = vmatprep.subr.mxu0 0.0
        %318 = vmatpush1.xpose.msra.mxu0 0.0
        %319 = vmatprep.subr.mxu0 0.0
        %320 = vmatpush1.xpose.msra.mxu0 0.0
        %321 = vmatprep.subr.mxu0 0.0
        %322 = vmatpush1.xpose.msra.mxu0 0.0
        %323 = vmatprep.subr.mxu0 0.0
        %324 = vmatpush1.xpose.msra.mxu0 0.0
        %325 = vmatprep.subr.mxu0 0.0
        %326 = vmatpush1.xpose.msra.mxu0 0.0
        %327 = vmatprep.subr.mxu0 0.0
        %328 = vmatpush1.xpose.msra.mxu0 0.0
        %329 = vmatprep.subr.mxu0 0.0
        %330 = vmatpush1.xpose.msra.mxu0 0.0
        %331 = vmatprep.subr.mxu0 0.0
        %332 = vmatpush1.xpose.msra.mxu0 0.0
        %333 = vmatprep.subr.mxu0 0.0
        %334 = vmatpush1.xpose.msra.mxu0 0.0
        %335 = vmatprep.subr.mxu0 0.0
        %336 = vmatpush1.xpose.msra.mxu0 0.0
        %337 = vmatprep.subr.mxu0 0.0
        %338 = vmatpush1.xpose.msra.mxu0 0.0
        %339 = vmatprep.subr.mxu0 0.0
        %340 = vmatpush1.xpose.msra.mxu0 0.0
        %341 = vmatprep.subr.mxu0 0.0
        %342 = vmatpush1.xpose.msra.mxu0 0.0
        %343 = vmatprep.subr.mxu0 0.0
        %344 = vmatpush1.xpose.msra.mxu0 0.0
        %345 = vmatprep.subr.mxu0 0.0
        %346 = vmatpush1.xpose.msra.mxu0 0.0
        %347 = vmatprep.subr.mxu0 0.0
        %348 = vmatpush1.xpose.msra.mxu0 0.0
        %349 = vmatprep.subr.mxu0 0.0
        %350 = vmatpush1.xpose.msra.mxu0 0.0
        %351 = vmatprep.subr.mxu0 0.0
        %352 = vmatpush1.xpose.msra.mxu0 0.0
        %353 = vmatprep.subr.mxu0 0.0
        %354 = vmatpush1.xpose.msra.mxu0 0.0
        %355 = vmatprep.subr.mxu0 0.0
        %356 = vmatpush1.xpose.msra.mxu0 0.0
        %357 = vmatprep.subr.mxu0 0.0
        %358 = vmatpush1.xpose.msra.mxu0 0.0
        %359 = vmatprep.subr.mxu0 0.0
        %360 = vmatpush1.xpose.msra.mxu0 0.0
        %361 = vmatprep.mubr.f32.mxu0 0.0
        %362 = vmatmul.mubr.f32.gmra.mrb[0].mxu0 %v293
        %v363 = vpop.f32.mrb[0].mxu0
        %v364 = vadd.f32 0.0, %v363
        %v365 = vpop.f32.mrb[0].mxu0
        %366 = vdwg.mxu0
        %vm367 = vcmask 64512
        %v368 = vsel %vm367, %v364, -inf
        %369 = vmax.xlane.f32.xlu0 %v368
        %v370 = vpop.xlane.xlu0 %369
        %v371 = vsub.f32 %v364, %v370
        %v372 = vmul.f32 %v371, 1.442695
        %v373 = vpow.pop %v372
        %v374 = vsel %vm367, %v373, 0.0
        %375 = vadd.xlane.f32.xlu0 %v374
        %v376 = vpop.xlane.xlu0 %375
        %v377 = vrcp.pop %v376
        %v378 = vmul.f32 %v373, %v377
        %v380 = vsel %vm367, %v378, 0
        %382 = vmatprep.subr.mxu0 0.0
        %383 = vmatpush1.msra.mxu0 %v287
        %384 = vmatprep.subr.mxu0 0.0
        %385 = vmatpush1.msra.mxu0 0.0
        %386 = vmatprep.subr.mxu0 0.0
        %387 = vmatpush1.msra.mxu0 0.0
        %388 = vmatprep.subr.mxu0 0.0
        %389 = vmatpush1.msra.mxu0 0.0
        %390 = vmatprep.subr.mxu0 0.0
        %391 = vmatpush1.msra.mxu0 0.0
        %392 = vmatprep.subr.mxu0 0.0
        %393 = vmatpush1.msra.mxu0 0.0
        %394 = vmatprep.subr.mxu0 0.0
        %395 = vmatpush1.msra.mxu0 0.0
        %396 = vmatprep.subr.mxu0 0.0
        %397 = vmatpush1.msra.mxu0 0.0
        %398 = vmatprep.subr.mxu0 0.0
        %399 = vmatpush1.msra.mxu0 0.0
        %400 = vmatprep.subr.mxu0 0.0
        %401 = vmatpush1.msra.mxu0 0.0
        %402 = vmatprep.subr.mxu0 0.0
        %403 = vmatpush1.msra.mxu0 0.0
        %404 = vmatprep.subr.mxu0 0.0
        %405 = vmatpush1.msra.mxu0 0.0
        %406 = vmatprep.subr.mxu0 0.0
        %407 = vmatpush1.msra.mxu0 0.0
        %408 = vmatprep.subr.mxu0 0.0
        %409 = vmatpush1.msra.mxu0 0.0
        %410 = vmatprep.subr.mxu0 0.0
        %411 = vmatpush1.msra.mxu0 0.0
        %412 = vmatprep.subr.mxu0 0.0
        %413 = vmatpush1.msra.mxu0 0.0
        %414 = vmatprep.subr.mxu0 0.0
        %415 = vmatpush1.msra.mxu0 0.0
        %416 = vmatprep.subr.mxu0 0.0
        %417 = vmatpush1.msra.mxu0 0.0
        %418 = vmatprep.subr.mxu0 0.0
        %419 = vmatpush1.msra.mxu0 0.0
        %420 = vmatprep.subr.mxu0 0.0
        %421 = vmatpush1.msra.mxu0 0.0
        %422 = vmatprep.subr.mxu0 0.0
        %423 = vmatpush1.msra.mxu0 0.0
        %424 = vmatprep.subr.mxu0 0.0
        %425 = vmatpush1.msra.mxu0 0.0
        %426 = vmatprep.subr.mxu0 0.0
        %427 = vmatpush1.msra.mxu0 0.0
        %428 = vmatprep.subr.mxu0 0.0
        %429 = vmatpush1.msra.mxu0 0.0
        %430 = vmatprep.subr.mxu0 0.0
        %431 = vmatpush1.msra.mxu0 0.0
        %432 = vmatprep.subr.mxu0 0.0
        %433 = vmatpush1.msra.mxu0 0.0
        %434 = vmatprep.subr.mxu0 0.0
        %435 = vmatpush1.msra.mxu0 0.0
        %436 = vmatprep.subr.mxu0 0.0
        %437 = vmatpush1.msra.mxu0 0.0
        %438 = vmatprep.subr.mxu0 0.0
        %439 = vmatpush1.msra.mxu0 0.0
        %440 = vmatprep.subr.mxu0 0.0
        %441 = vmatpush1.msra.mxu0 0.0
        %442 = vmatprep.subr.mxu0 0.0
        %443 = vmatpush1.msra.mxu0 0.0
        %444 = vmatprep.subr.mxu0 0.0
        %445 = vmatpush1.msra.mxu0 0.0
        %446 = vmatprep.mubr.f32.mxu0 0.0
        %447 = vmatmul.mubr.f32.gmra.mrb[0].mxu0 %v380
        %v448 = vpop.f32.mrb[0].mxu0
        %v449 = vadd.f32 0.0, %v448
        %v450 = vpop.f32.mrb[0].mxu0
        %451 = vdwg.mxu0
        %v452 = vld [vmem:[%s3] sm:$0xff]
        %v453 = vld [vmem:[%s3 + $0x8] sm:$0xff]
        %v454 = vld [vmem:[%s3 + $0x10] sm:$0xff]
        %v455 = vld [vmem:[%s3 + $0x18] sm:$0xff]
        %456 = vrot.lane.b32.xlu0 %v285, 112
        %v457 = vpop.permute.xlu0 %456
        %458 = vrot.lane.b32.xlu0 %v285, 48
        %v459 = vpop.permute.xlu0 %458
        %v460 = vsel %vm292, %v457, 0
        %v462 = vsel %vm292, %v459, 0
        %464 = vmatprep.subr.mxu0 0.0
        %465 = vmatpush1.xpose.msra.mxu0 %v462
        %466 = vmatprep.subr.mxu0 0.0
        %467 = vmatpush1.xpose.msra.mxu0 0.0
        %468 = vmatprep.subr.mxu0 0.0
        %469 = vmatpush1.xpose.msra.mxu0 0.0
        %470 = vmatprep.subr.mxu0 0.0
        %471 = vmatpush1.xpose.msra.mxu0 0.0
        %472 = vmatprep.subr.mxu0 0.0
        %473 = vmatpush1.xpose.msra.mxu0 0.0
        %474 = vmatprep.subr.mxu0 0.0
        %475 = vmatpush1.xpose.msra.mxu0 0.0
        %476 = vmatprep.subr.mxu0 0.0
        %477 = vmatpush1.xpose.msra.mxu0 0.0
        %478 = vmatprep.subr.mxu0 0.0
        %479 = vmatpush1.xpose.msra.mxu0 0.0
        %480 = vmatprep.subr.mxu0 0.0
        %481 = vmatpush1.xpose.msra.mxu0 0.0
        %482 = vmatprep.subr.mxu0 0.0
        %483 = vmatpush1.xpose.msra.mxu0 0.0
        %484 = vmatprep.subr.mxu0 0.0
        %485 = vmatpush1.xpose.msra.mxu0 0.0
        %486 = vmatprep.subr.mxu0 0.0
        %487 = vmatpush1.xpose.msra.mxu0 0.0
        %488 = vmatprep.subr.mxu0 0.0
        %489 = vmatpush1.xpose.msra.mxu0 0.0
        %490 = vmatprep.subr.mxu0 0.0
        %491 = vmatpush1.xpose.msra.mxu0 0.0
        %492 = vmatprep.subr.mxu0 0.0
        %493 = vmatpush1.xpose.msra.mxu0 0.0
        %494 = vmatprep.subr.mxu0 0.0
        %495 = vmatpush1.xpose.msra.mxu0 0.0
        %496 = vmatprep.subr.mxu0 0.0
        %497 = vmatpush1.xpose.msra.mxu0 0.0
        %498 = vmatprep.subr.mxu0 0.0
        %499 = vmatpush1.xpose.msra.mxu0 0.0
        %500 = vmatprep.subr.mxu0 0.0
        %501 = vmatpush1.xpose.msra.mxu0 0.0
        %502 = vmatprep.subr.mxu0 0.0
        %503 = vmatpush1.xpose.msra.mxu0 0.0
        %504 = vmatprep.subr.mxu0 0.0
        %505 = vmatpush1.xpose.msra.mxu0 0.0
        %506 = vmatprep.subr.mxu0 0.0
        %507 = vmatpush1.xpose.msra.mxu0 0.0
        %508 = vmatprep.subr.mxu0 0.0
        %509 = vmatpush1.xpose.msra.mxu0 0.0
        %510 = vmatprep.subr.mxu0 0.0
        %511 = vmatpush1.xpose.msra.mxu0 0.0
        %512 = vmatprep.subr.mxu0 0.0
        %513 = vmatpush1.xpose.msra.mxu0 0.0
        %514 = vmatprep.subr.mxu0 0.0
        %515 = vmatpush1.xpose.msra.mxu0 0.0
        %516 = vmatprep.subr.mxu0 0.0
        %517 = vmatpush1.xpose.msra.mxu0 0.0
        %518 = vmatprep.subr.mxu0 0.0
        %519 = vmatpush1.xpose.msra.mxu0 0.0
        %520 = vmatprep.subr.mxu0 0.0
        %521 = vmatpush1.xpose.msra.mxu0 0.0
        %522 = vmatprep.subr.mxu0 0.0
        %523 = vmatpush1.xpose.msra.mxu0 0.0
        %524 = vmatprep.subr.mxu0 0.0
        %525 = vmatpush1.xpose.msra.mxu0 0.0
        %526 = vmatprep.subr.mxu0 0.0
        %527 = vmatpush1.xpose.msra.mxu0 0.0
        %528 = vmatprep.mubr.f32.mxu0 0.0
        %529 = vmatmul.mubr.f32.gmra.mrb[0].mxu0 %v460
        %v530 = vpop.f32.mrb[0].mxu0
        %v531 = vadd.f32 0.0, %v530
        %v532 = vpop.f32.mrb[0].mxu0
        %533 = vdwg.mxu0
        %v534 = vsel %vm367, %v531, -inf
        %535 = vmax.xlane.f32.xlu0 %v534
        %v536 = vpop.xlane.xlu0 %535
        %v537 = vsub.f32 %v531, %v536
        %v538 = vmul.f32 %v537, 1.442695
        %v539 = vpow.pop %v538
        %v540 = vsel %vm367, %v539, 0.0
        %541 = vadd.xlane.f32.xlu0 %v540
        %v542 = vpop.xlane.xlu0 %541
        %v543 = vrcp.pop %v542
        %v544 = vmul.f32 %v539, %v543
        %546 = vrot.lane.b32.xlu0 %v287, 96
        %v547 = vpop.permute.xlu0 %546
        %v550 = vsel %vm367, %v544, 0
        %552 = vmatprep.subr.mxu0 0.0
        %553 = vmatpush1.msra.mxu0 %v547
        %554 = vmatprep.subr.mxu0 0.0
        %555 = vmatpush1.msra.mxu0 0.0
        %556 = vmatprep.subr.mxu0 0.0
        %557 = vmatpush1.msra.mxu0 0.0
        %558 = vmatprep.subr.mxu0 0.0
        %559 = vmatpush1.msra.mxu0 0.0
        %560 = vmatprep.subr.mxu0 0.0
        %561 = vmatpush1.msra.mxu0 0.0
        %562 = vmatprep.subr.mxu0 0.0
        %563 = vmatpush1.msra.mxu0 0.0
        %564 = vmatprep.subr.mxu0 0.0
        %565 = vmatpush1.msra.mxu0 0.0
        %566 = vmatprep.subr.mxu0 0.0
        %567 = vmatpush1.msra.mxu0 0.0
        %568 = vmatprep.subr.mxu0 0.0
        %569 = vmatpush1.msra.mxu0 0.0
        %570 = vmatprep.subr.mxu0 0.0
        %571 = vmatpush1.msra.mxu0 0.0
        %572 = vmatprep.subr.mxu0 0.0
        %573 = vmatpush1.msra.mxu0 0.0
        %574 = vmatprep.subr.mxu0 0.0
        %575 = vmatpush1.msra.mxu0 0.0
        %576 = vmatprep.subr.mxu0 0.0
        %577 = vmatpush1.msra.mxu0 0.0
        %578 = vmatprep.subr.mxu0 0.0
        %579 = vmatpush1.msra.mxu0 0.0
        %580 = vmatprep.subr.mxu0 0.0
        %581 = vmatpush1.msra.mxu0 0.0
        %582 = vmatprep.subr.mxu0 0.0
        %583 = vmatpush1.msra.mxu0 0.0
        %584 = vmatprep.subr.mxu0 0.0
        %585 = vmatpush1.msra.mxu0 0.0
        %586 = vmatprep.subr.mxu0 0.0
        %587 = vmatpush1.msra.mxu0 0.0
        %588 = vmatprep.subr.mxu0 0.0
        %589 = vmatpush1.msra.mxu0 0.0
        %590 = vmatprep.subr.mxu0 0.0
        %591 = vmatpush1.msra.mxu0 0.0
        %592 = vmatprep.subr.mxu0 0.0
        %593 = vmatpush1.msra.mxu0 0.0
        %594 = vmatprep.subr.mxu0 0.0
        %595 = vmatpush1.msra.mxu0 0.0
        %596 = vmatprep.subr.mxu0 0.0
        %597 = vmatpush1.msra.mxu0 0.0
        %598 = vmatprep.subr.mxu0 0.0
        %599 = vmatpush1.msra.mxu0 0.0
        %600 = vmatprep.subr.mxu0 0.0
        %601 = vmatpush1.msra.mxu0 0.0
        %602 = vmatprep.subr.mxu0 0.0
        %603 = vmatpush1.msra.mxu0 0.0
        %604 = vmatprep.subr.mxu0 0.0
        %605 = vmatpush1.msra.mxu0 0.0
        %606 = vmatprep.subr.mxu0 0.0
        %607 = vmatpush1.msra.mxu0 0.0
        %608 = vmatprep.subr.mxu0 0.0
        %609 = vmatpush1.msra.mxu0 0.0
        %610 = vmatprep.subr.mxu0 0.0
        %611 = vmatpush1.msra.mxu0 0.0
        %612 = vmatprep.subr.mxu0 0.0
        %613 = vmatpush1.msra.mxu0 0.0
        %614 = vmatprep.subr.mxu0 0.0
        %615 = vmatpush1.msra.mxu0 0.0
        %616 = vmatprep.mubr.f32.mxu0 0.0
        %617 = vmatmul.mubr.f32.gmra.mrb[0].mxu0 %v550
        %v618 = vpop.f32.mrb[0].mxu0
        %v619 = vadd.f32 0.0, %v618
        %v620 = vpop.f32.mrb[0].mxu0
        %621 = vdwg.mxu0
        %v622 = vld [vmem:[%s3 + $0x20] sm:$0xff]
        %v623 = vld [vmem:[%s3 + $0x28] sm:$0xff]
        %v624 = vld [vmem:[%s3 + $0x30] sm:$0xff]
        %v625 = vld [vmem:[%s3 + $0x38] sm:$0xff]
        %v627 = vsel %vm214, %v619, 0
        %629 = vmatprep.subr.mxu0 0.0
        %630 = vmatpush1.msra.mxu0 %v622
        %631 = vmatprep.subr.mxu0 0.0
        %632 = vmatpush1.msra.mxu0 %v623
        %633 = vmatprep.subr.mxu0 0.0
        %634 = vmatpush1.msra.mxu0 %v624
        %635 = vmatprep.subr.mxu0 0.0
        %636 = vmatpush1.msra.mxu0 %v625
        %637 = vmatprep.subr.mxu0 0.0
        %638 = vmatpush1.msra.mxu0 0.0
        %639 = vmatprep.subr.mxu0 0.0
        %640 = vmatpush1.msra.mxu0 0.0
        %641 = vmatprep.subr.mxu0 0.0
        %642 = vmatpush1.msra.mxu0 0.0
        %643 = vmatprep.subr.mxu0 0.0
        %644 = vmatpush1.msra.mxu0 0.0
        %645 = vmatprep.subr.mxu0 0.0
        %646 = vmatpush1.msra.mxu0 0.0
        %647 = vmatprep.subr.mxu0 0.0
        %648 = vmatpush1.msra.mxu0 0.0
        %649 = vmatprep.subr.mxu0 0.0
        %650 = vmatpush1.msra.mxu0 0.0
        %651 = vmatprep.subr.mxu0 0.0
        %652 = vmatpush1.msra.mxu0 0.0
        %653 = vmatprep.subr.mxu0 0.0
        %654 = vmatpush1.msra.mxu0 0.0
        %655 = vmatprep.subr.mxu0 0.0
        %656 = vmatpush1.msra.mxu0 0.0
        %657 = vmatprep.subr.mxu0 0.0
        %658 = vmatpush1.msra.mxu0 0.0
        %659 = vmatprep.subr.mxu0 0.0
        %660 = vmatpush1.msra.mxu0 0.0
        %661 = vmatprep.subr.mxu0 0.0
        %662 = vmatpush1.msra.mxu0 0.0
        %663 = vmatprep.subr.mxu0 0.0
        %664 = vmatpush1.msra.mxu0 0.0
        %665 = vmatprep.subr.mxu0 0.0
        %666 = vmatpush1.msra.mxu0 0.0
        %667 = vmatprep.subr.mxu0 0.0
        %668 = vmatpush1.msra.mxu0 0.0
        %669 = vmatprep.subr.mxu0 0.0
        %670 = vmatpush1.msra.mxu0 0.0
        %671 = vmatprep.subr.mxu0 0.0
        %672 = vmatpush1.msra.mxu0 0.0
        %673 = vmatprep.subr.mxu0 0.0
        %674 = vmatpush1.msra.mxu0 0.0
        %675 = vmatprep.subr.mxu0 0.0
        %676 = vmatpush1.msra.mxu0 0.0
        %677 = vmatprep.subr.mxu0 0.0
        %678 = vmatpush1.msra.mxu0 0.0
        %679 = vmatprep.subr.mxu0 0.0
        %680 = vmatpush1.msra.mxu0 0.0
        %681 = vmatprep.subr.mxu0 0.0
        %682 = vmatpush1.msra.mxu0 0.0
        %683 = vmatprep.subr.mxu0 0.0
        %684 = vmatpush1.msra.mxu0 0.0
        %685 = vmatprep.subr.mxu0 0.0
        %686 = vmatpush1.msra.mxu0 0.0
        %687 = vmatprep.subr.mxu0 0.0
        %688 = vmatpush1.msra.mxu0 0.0
        %689 = vmatprep.subr.mxu0 0.0
        %690 = vmatpush1.msra.mxu0 0.0
        %691 = vmatprep.subr.mxu0 0.0
        %692 = vmatpush1.msra.mxu0 0.0
        %693 = vmatprep.mubr.f32.mxu0 0.0
        %694 = vmatmul.mubr.f32.gmra.mrb[0].mxu0 %v627
        %v695 = vpop.f32.mrb[0].mxu0
        %v696 = vadd.f32 0.0, %v695
        %v697 = vpop.f32.mrb[0].mxu0
        %698 = vdwg.mxu0
        %v700 = vsel %vm214, %v449, 0
        %702 = vmatprep.subr.mxu0 0.0
        %703 = vmatpush1.msra.mxu0 %v452
        %704 = vmatprep.subr.mxu0 0.0
        %705 = vmatpush1.msra.mxu0 %v453
        %706 = vmatprep.subr.mxu0 0.0
        %707 = vmatpush1.msra.mxu0 %v454
        %708 = vmatprep.subr.mxu0 0.0
        %709 = vmatpush1.msra.mxu0 %v455
        %710 = vmatprep.subr.mxu0 0.0
        %711 = vmatpush1.msra.mxu0 0.0
        %712 = vmatprep.subr.mxu0 0.0
        %713 = vmatpush1.msra.mxu0 0.0
        %714 = vmatprep.subr.mxu0 0.0
        %715 = vmatpush1.msra.mxu0 0.0
        %716 = vmatprep.subr.mxu0 0.0
        %717 = vmatpush1.msra.mxu0 0.0
        %718 = vmatprep.subr.mxu0 0.0
        %719 = vmatpush1.msra.mxu0 0.0
        %720 = vmatprep.subr.mxu0 0.0
        %721 = vmatpush1.msra.mxu0 0.0
        %722 = vmatprep.subr.mxu0 0.0
        %723 = vmatpush1.msra.mxu0 0.0
        %724 = vmatprep.subr.mxu0 0.0
        %725 = vmatpush1.msra.mxu0 0.0
        %726 = vmatprep.subr.mxu0 0.0
        %727 = vmatpush1.msra.mxu0 0.0
        %728 = vmatprep.subr.mxu0 0.0
        %729 = vmatpush1.msra.mxu0 0.0
        %730 = vmatprep.subr.mxu0 0.0
        %731 = vmatpush1.msra.mxu0 0.0
        %732 = vmatprep.subr.mxu0 0.0
        %733 = vmatpush1.msra.mxu0 0.0
        %734 = vmatprep.subr.mxu0 0.0
        %735 = vmatpush1.msra.mxu0 0.0
        %736 = vmatprep.subr.mxu0 0.0
        %737 = vmatpush1.msra.mxu0 0.0
        %738 = vmatprep.subr.mxu0 0.0
        %739 = vmatpush1.msra.mxu0 0.0
        %740 = vmatprep.subr.mxu0 0.0
        %741 = vmatpush1.msra.mxu0 0.0
        %742 = vmatprep.subr.mxu0 0.0
        %743 = vmatpush1.msra.mxu0 0.0
        %744 = vmatprep.subr.mxu0 0.0
        %745 = vmatpush1.msra.mxu0 0.0
        %746 = vmatprep.subr.mxu0 0.0
        %747 = vmatpush1.msra.mxu0 0.0
        %748 = vmatprep.subr.mxu0 0.0
        %749 = vmatpush1.msra.mxu0 0.0
        %750 = vmatprep.subr.mxu0 0.0
        %751 = vmatpush1.msra.mxu0 0.0
        %752 = vmatprep.subr.mxu0 0.0
        %753 = vmatpush1.msra.mxu0 0.0
        %754 = vmatprep.subr.mxu0 0.0
        %755 = vmatpush1.msra.mxu0 0.0
        %756 = vmatprep.subr.mxu0 0.0
        %757 = vmatpush1.msra.mxu0 0.0
        %758 = vmatprep.subr.mxu0 0.0
        %759 = vmatpush1.msra.mxu0 0.0
        %760 = vmatprep.subr.mxu0 0.0
        %761 = vmatpush1.msra.mxu0 0.0
        %762 = vmatprep.subr.mxu0 0.0
        %763 = vmatpush1.msra.mxu0 0.0
        %764 = vmatprep.subr.mxu0 0.0
        %765 = vmatpush1.msra.mxu0 0.0
        %766 = vmatprep.mubr.f32.mxu0 0.0
        %767 = vmatmul.mubr.f32.gmra.mrb[0].mxu0 %v700
        %v768 = vpop.f32.mrb[0].mxu0
        %v769 = vadd.f32 %v696, %v768
        %v770 = vpop.f32.mrb[0].mxu0
        %771 = vdwg.mxu0
        %772 = vrot.lane.b32.xlu0 %v285, 96
        %v773 = vpop.permute.xlu0 %772
        %774 = vrot.lane.b32.xlu0 %v285, 32
        %v775 = vpop.permute.xlu0 %774
        %v776 = vsel %vm292, %v773, 0
        %v778 = vsel %vm292, %v775, 0
        %780 = vmatprep.subr.mxu0 0.0
        %781 = vmatpush1.xpose.msra.mxu0 %v778
        %782 = vmatprep.subr.mxu0 0.0
        %783 = vmatpush1.xpose.msra.mxu0 0.0
        %784 = vmatprep.subr.mxu0 0.0
        %785 = vmatpush1.xpose.msra.mxu0 0.0
        %786 = vmatprep.subr.mxu0 0.0
        %787 = vmatpush1.xpose.msra.mxu0 0.0
        %788 = vmatprep.subr.mxu0 0.0
        %789 = vmatpush1.xpose.msra.mxu0 0.0
        %790 = vmatprep.subr.mxu0 0.0
        %791 = vmatpush1.xpose.msra.mxu0 0.0
        %792 = vmatprep.subr.mxu0 0.0
        %793 = vmatpush1.xpose.msra.mxu0 0.0
        %794 = vmatprep.subr.mxu0 0.0
        %795 = vmatpush1.xpose.msra.mxu0 0.0
        %796 = vmatprep.subr.mxu0 0.0
        %797 = vmatpush1.xpose.msra.mxu0 0.0
        %798 = vmatprep.subr.mxu0 0.0
        %799 = vmatpush1.xpose.msra.mxu0 0.0
        %800 = vmatprep.subr.mxu0 0.0
        %801 = vmatpush1.xpose.msra.mxu0 0.0
        %802 = vmatprep.subr.mxu0 0.0
        %803 = vmatpush1.xpose.msra.mxu0 0.0
        %804 = vmatprep.subr.mxu0 0.0
        %805 = vmatpush1.xpose.msra.mxu0 0.0
        %806 = vmatprep.subr.mxu0 0.0
        %807 = vmatpush1.xpose.msra.mxu0 0.0
        %808 = vmatprep.subr.mxu0 0.0
        %809 = vmatpush1.xpose.msra.mxu0 0.0
        %810 = vmatprep.subr.mxu0 0.0
        %811 = vmatpush1.xpose.msra.mxu0 0.0
        %812 = vmatprep.subr.mxu0 0.0
        %813 = vmatpush1.xpose.msra.mxu0 0.0
        %814 = vmatprep.subr.mxu0 0.0
        %815 = vmatpush1.xpose.msra.mxu0 0.0
        %816 = vmatprep.subr.mxu0 0.0
        %817 = vmatpush1.xpose.msra.mxu0 0.0
        %818 = vmatprep.subr.mxu0 0.0
        %819 = vmatpush1.xpose.msra.mxu0 0.0
        %820 = vmatprep.subr.mxu0 0.0
        %821 = vmatpush1.xpose.msra.mxu0 0.0
        %822 = vmatprep.subr.mxu0 0.0
        %823 = vmatpush1.xpose.msra.mxu0 0.0
        %824 = vmatprep.subr.mxu0 0.0
        %825 = vmatpush1.xpose.msra.mxu0 0.0
        %826 = vmatprep.subr.mxu0 0.0
        %827 = vmatpush1.xpose.msra.mxu0 0.0
        %828 = vmatprep.subr.mxu0 0.0
        %829 = vmatpush1.xpose.msra.mxu0 0.0
        %830 = vmatprep.subr.mxu0 0.0
        %831 = vmatpush1.xpose.msra.mxu0 0.0
        %832 = vmatprep.subr.mxu0 0.0
        %833 = vmatpush1.xpose.msra.mxu0 0.0
        %834 = vmatprep.subr.mxu0 0.0
        %835 = vmatpush1.xpose.msra.mxu0 0.0
        %836 = vmatprep.subr.mxu0 0.0
        %837 = vmatpush1.xpose.msra.mxu0 0.0
        %838 = vmatprep.subr.mxu0 0.0
        %839 = vmatpush1.xpose.msra.mxu0 0.0
        %840 = vmatprep.subr.mxu0 0.0
        %841 = vmatpush1.xpose.msra.mxu0 0.0
        %842 = vmatprep.subr.mxu0 0.0
        %843 = vmatpush1.xpose.msra.mxu0 0.0
        %844 = vmatprep.mubr.f32.mxu0 0.0
        %845 = vmatmul.mubr.f32.gmra.mrb[0].mxu0 %v776
        %v846 = vpop.f32.mrb[0].mxu0
        %v847 = vadd.f32 0.0, %v846
        %v848 = vpop.f32.mrb[0].mxu0
        %849 = vdwg.mxu0
        %v850 = vsel %vm367, %v847, -inf
        %851 = vmax.xlane.f32.xlu0 %v850
        %v852 = vpop.xlane.xlu0 %851
        %v853 = vsub.f32 %v847, %v852
        %v854 = vmul.f32 %v853, 1.442695
        %v855 = vpow.pop %v854
        %v856 = vsel %vm367, %v855, 0.0
        %857 = vadd.xlane.f32.xlu0 %v856
        %v858 = vpop.xlane.xlu0 %857
        %v859 = vrcp.pop %v858
        %v860 = vmul.f32 %v855, %v859
        %861 = vrot.lane.b32.xlu0 %v287, 64
        %v862 = vpop.permute.xlu0 %861
        %v865 = vsel %vm367, %v860, 0
        %867 = vmatprep.subr.mxu0 0.0
        %868 = vmatpush1.msra.mxu0 %v862
        %869 = vmatprep.subr.mxu0 0.0
        %870 = vmatpush1.msra.mxu0 0.0
        %871 = vmatprep.subr.mxu0 0.0
        %872 = vmatpush1.msra.mxu0 0.0
        %873 = vmatprep.subr.mxu0 0.0
        %874 = vmatpush1.msra.mxu0 0.0
        %875 = vmatprep.subr.mxu0 0.0
        %876 = vmatpush1.msra.mxu0 0.0
        %877 = vmatprep.subr.mxu0 0.0
        %878 = vmatpush1.msra.mxu0 0.0
        %879 = vmatprep.subr.mxu0 0.0
        %880 = vmatpush1.msra.mxu0 0.0
        %881 = vmatprep.subr.mxu0 0.0
        %882 = vmatpush1.msra.mxu0 0.0
        %883 = vmatprep.subr.mxu0 0.0
        %884 = vmatpush1.msra.mxu0 0.0
        %885 = vmatprep.subr.mxu0 0.0
        %886 = vmatpush1.msra.mxu0 0.0
        %887 = vmatprep.subr.mxu0 0.0
        %888 = vmatpush1.msra.mxu0 0.0
        %889 = vmatprep.subr.mxu0 0.0
        %890 = vmatpush1.msra.mxu0 0.0
        %891 = vmatprep.subr.mxu0 0.0
        %892 = vmatpush1.msra.mxu0 0.0
        %893 = vmatprep.subr.mxu0 0.0
        %894 = vmatpush1.msra.mxu0 0.0
        %895 = vmatprep.subr.mxu0 0.0
        %896 = vmatpush1.msra.mxu0 0.0
        %897 = vmatprep.subr.mxu0 0.0
        %898 = vmatpush1.msra.mxu0 0.0
        %899 = vmatprep.subr.mxu0 0.0
        %900 = vmatpush1.msra.mxu0 0.0
        %901 = vmatprep.subr.mxu0 0.0
        %902 = vmatpush1.msra.mxu0 0.0
        %903 = vmatprep.subr.mxu0 0.0
        %904 = vmatpush1.msra.mxu0 0.0
        %905 = vmatprep.subr.mxu0 0.0
        %906 = vmatpush1.msra.mxu0 0.0
        %907 = vmatprep.subr.mxu0 0.0
        %908 = vmatpush1.msra.mxu0 0.0
        %909 = vmatprep.subr.mxu0 0.0
        %910 = vmatpush1.msra.mxu0 0.0
        %911 = vmatprep.subr.mxu0 0.0
        %912 = vmatpush1.msra.mxu0 0.0
        %913 = vmatprep.subr.mxu0 0.0
        %914 = vmatpush1.msra.mxu0 0.0
        %915 = vmatprep.subr.mxu0 0.0
        %916 = vmatpush1.msra.mxu0 0.0
        %917 = vmatprep.subr.mxu0 0.0
        %918 = vmatpush1.msra.mxu0 0.0
        %919 = vmatprep.subr.mxu0 0.0
        %920 = vmatpush1.msra.mxu0 0.0
        %921 = vmatprep.subr.mxu0 0.0
        %922 = vmatpush1.msra.mxu0 0.0
        %923 = vmatprep.subr.mxu0 0.0
        %924 = vmatpush1.msra.mxu0 0.0
        %925 = vmatprep.subr.mxu0 0.0
        %926 = vmatpush1.msra.mxu0 0.0
        %927 = vmatprep.subr.mxu0 0.0
        %928 = vmatpush1.msra.mxu0 0.0
        %929 = vmatprep.subr.mxu0 0.0
        %930 = vmatpush1.msra.mxu0 0.0
        %931 = vmatprep.mubr.f32.mxu0 0.0
        %932 = vmatmul.mubr.f32.gmra.mrb[0].mxu0 %v865
        %v933 = vpop.f32.mrb[0].mxu0
        %v934 = vadd.f32 0.0, %v933
        %v935 = vpop.f32.mrb[0].mxu0
        %936 = vdwg.mxu0
        %v937 = vld [vmem:[%s3 + $0x40] sm:$0xff]
        %v938 = vld [vmem:[%s3 + $0x48] sm:$0xff]
        %v939 = vld [vmem:[%s3 + $0x50] sm:$0xff]
        %v940 = vld [vmem:[%s3 + $0x58] sm:$0xff]
        %v942 = vsel %vm214, %v934, 0
        %944 = vmatprep.subr.mxu0 0.0
        %945 = vmatpush1.msra.mxu0 %v937
        %946 = vmatprep.subr.mxu0 0.0
        %947 = vmatpush1.msra.mxu0 %v938
        %948 = vmatprep.subr.mxu0 0.0
        %949 = vmatpush1.msra.mxu0 %v939
        %950 = vmatprep.subr.mxu0 0.0
        %951 = vmatpush1.msra.mxu0 %v940
        %952 = vmatprep.subr.mxu0 0.0
        %953 = vmatpush1.msra.mxu0 0.0
        %954 = vmatprep.subr.mxu0 0.0
        %955 = vmatpush1.msra.mxu0 0.0
        %956 = vmatprep.subr.mxu0 0.0
        %957 = vmatpush1.msra.mxu0 0.0
        %958 = vmatprep.subr.mxu0 0.0
        %959 = vmatpush1.msra.mxu0 0.0
        %960 = vmatprep.subr.mxu0 0.0
        %961 = vmatpush1.msra.mxu0 0.0
        %962 = vmatprep.subr.mxu0 0.0
        %963 = vmatpush1.msra.mxu0 0.0
        %964 = vmatprep.subr.mxu0 0.0
        %965 = vmatpush1.msra.mxu0 0.0
        %966 = vmatprep.subr.mxu0 0.0
        %967 = vmatpush1.msra.mxu0 0.0
        %968 = vmatprep.subr.mxu0 0.0
        %969 = vmatpush1.msra.mxu0 0.0
        %970 = vmatprep.subr.mxu0 0.0
        %971 = vmatpush1.msra.mxu0 0.0
        %972 = vmatprep.subr.mxu0 0.0
        %973 = vmatpush1.msra.mxu0 0.0
        %974 = vmatprep.subr.mxu0 0.0
        %975 = vmatpush1.msra.mxu0 0.0
        %976 = vmatprep.subr.mxu0 0.0
        %977 = vmatpush1.msra.mxu0 0.0
        %978 = vmatprep.subr.mxu0 0.0
        %979 = vmatpush1.msra.mxu0 0.0
        %980 = vmatprep.subr.mxu0 0.0
        %981 = vmatpush1.msra.mxu0 0.0
        %982 = vmatprep.subr.mxu0 0.0
        %983 = vmatpush1.msra.mxu0 0.0
        %984 = vmatprep.subr.mxu0 0.0
        %985 = vmatpush1.msra.mxu0 0.0
        %986 = vmatprep.subr.mxu0 0.0
        %987 = vmatpush1.msra.mxu0 0.0
        %988 = vmatprep.subr.mxu0 0.0
        %989 = vmatpush1.msra.mxu0 0.0
        %990 = vmatprep.subr.mxu0 0.0
        %991 = vmatpush1.msra.mxu0 0.0
        %992 = vmatprep.subr.mxu0 0.0
        %993 = vmatpush1.msra.mxu0 0.0
        %994 = vmatprep.subr.mxu0 0.0
        %995 = vmatpush1.msra.mxu0 0.0
        %996 = vmatprep.subr.mxu0 0.0
        %997 = vmatpush1.msra.mxu0 0.0
        %998 = vmatprep.subr.mxu0 0.0
        %999 = vmatpush1.msra.mxu0 0.0
        %1000 = vmatprep.subr.mxu0 0.0
        %1001 = vmatpush1.msra.mxu0 0.0
        %1002 = vmatprep.subr.mxu0 0.0
        %1003 = vmatpush1.msra.mxu0 0.0
        %1004 = vmatprep.subr.mxu0 0.0
        %1005 = vmatpush1.msra.mxu0 0.0
        %1006 = vmatprep.subr.mxu0 0.0
        %1007 = vmatpush1.msra.mxu0 0.0
        %1008 = vmatprep.mubr.f32.mxu0 0.0
        %1009 = vmatmul.mubr.f32.gmra.mrb[0].mxu0 %v942
        %v1010 = vpop.f32.mrb[0].mxu0
        %v1011 = vadd.f32 0.0, %v1010
        %v1012 = vpop.f32.mrb[0].mxu0
        %1013 = vdwg.mxu0
        %v1014 = vadd.f32 %v769, %v1011
        %1015 = vrot.lane.b32.xlu0 %v285, 80
        %v1016 = vpop.permute.xlu0 %1015
        %1017 = vrot.lane.b32.xlu0 %v285, 16
        %v1018 = vpop.permute.xlu0 %1017
        %v1019 = vsel %vm292, %v1016, 0
        %v1021 = vsel %vm292, %v1018, 0
        %1023 = vmatprep.subr.mxu0 0.0
        %1024 = vmatpush1.xpose.msra.mxu0 %v1021
        %1025 = vmatprep.subr.mxu0 0.0
        %1026 = vmatpush1.xpose.msra.mxu0 0.0
        %1027 = vmatprep.subr.mxu0 0.0
        %1028 = vmatpush1.xpose.msra.mxu0 0.0
        %1029 = vmatprep.subr.mxu0 0.0
        %1030 = vmatpush1.xpose.msra.mxu0 0.0
        %1031 = vmatprep.subr.mxu0 0.0
        %1032 = vmatpush1.xpose.msra.mxu0 0.0
        %1033 = vmatprep.subr.mxu0 0.0
        %1034 = vmatpush1.xpose.msra.mxu0 0.0
        %1035 = vmatprep.subr.mxu0 0.0
        %1036 = vmatpush1.xpose.msra.mxu0 0.0
        %1037 = vmatprep.subr.mxu0 0.0
        %1038 = vmatpush1.xpose.msra.mxu0 0.0
        %1039 = vmatprep.subr.mxu0 0.0
        %1040 = vmatpush1.xpose.msra.mxu0 0.0
        %1041 = vmatprep.subr.mxu0 0.0
        %1042 = vmatpush1.xpose.msra.mxu0 0.0
        %1043 = vmatprep.subr.mxu0 0.0
        %1044 = vmatpush1.xpose.msra.mxu0 0.0
        %1045 = vmatprep.subr.mxu0 0.0
        %1046 = vmatpush1.xpose.msra.mxu0 0.0
        %1047 = vmatprep.subr.mxu0 0.0
        %1048 = vmatpush1.xpose.msra.mxu0 0.0
        %1049 = vmatprep.subr.mxu0 0.0
        %1050 = vmatpush1.xpose.msra.mxu0 0.0
        %1051 = vmatprep.subr.mxu0 0.0
        %1052 = vmatpush1.xpose.msra.mxu0 0.0
        %1053 = vmatprep.subr.mxu0 0.0
        %1054 = vmatpush1.xpose.msra.mxu0 0.0
        %1055 = vmatprep.subr.mxu0 0.0
        %1056 = vmatpush1.xpose.msra.mxu0 0.0
        %1057 = vmatprep.subr.mxu0 0.0
        %1058 = vmatpush1.xpose.msra.mxu0 0.0
        %1059 = vmatprep.subr.mxu0 0.0
        %1060 = vmatpush1.xpose.msra.mxu0 0.0
        %1061 = vmatprep.subr.mxu0 0.0
        %1062 = vmatpush1.xpose.msra.mxu0 0.0
        %1063 = vmatprep.subr.mxu0 0.0
        %1064 = vmatpush1.xpose.msra.mxu0 0.0
        %1065 = vmatprep.subr.mxu0 0.0
        %1066 = vmatpush1.xpose.msra.mxu0 0.0
        %1067 = vmatprep.subr.mxu0 0.0
        %1068 = vmatpush1.xpose.msra.mxu0 0.0
        %1069 = vmatprep.subr.mxu0 0.0
        %1070 = vmatpush1.xpose.msra.mxu0 0.0
        %1071 = vmatprep.subr.mxu0 0.0
        %1072 = vmatpush1.xpose.msra.mxu0 0.0
        %1073 = vmatprep.subr.mxu0 0.0
        %1074 = vmatpush1.xpose.msra.mxu0 0.0
        %1075 = vmatprep.subr.mxu0 0.0
        %1076 = vmatpush1.xpose.msra.mxu0 0.0
        %1077 = vmatprep.subr.mxu0 0.0
        %1078 = vmatpush1.xpose.msra.mxu0 0.0
        %1079 = vmatprep.subr.mxu0 0.0
        %1080 = vmatpush1.xpose.msra.mxu0 0.0
        %1081 = vmatprep.subr.mxu0 0.0
        %1082 = vmatpush1.xpose.msra.mxu0 0.0
        %1083 = vmatprep.subr.mxu0 0.0
        %1084 = vmatpush1.xpose.msra.mxu0 0.0
        %1085 = vmatprep.subr.mxu0 0.0
        %1086 = vmatpush1.xpose.msra.mxu0 0.0
        %1087 = vmatprep.mubr.f32.mxu0 0.0
        %1088 = vmatmul.mubr.f32.gmra.mrb[0].mxu0 %v1019
        %v1089 = vpop.f32.mrb[0].mxu0
        %v1090 = vadd.f32 0.0, %v1089
        %v1091 = vpop.f32.mrb[0].mxu0
        %1092 = vdwg.mxu0
        %v1093 = vsel %vm367, %v1090, -inf
        %1094 = vmax.xlane.f32.xlu0 %v1093
        %v1095 = vpop.xlane.xlu0 %1094
        %v1096 = vsub.f32 %v1090, %v1095
        %v1097 = vmul.f32 %v1096, 1.442695
        %v1098 = vpow.pop %v1097
        %v1099 = vsel %vm367, %v1098, 0.0
        %1100 = vadd.xlane.f32.xlu0 %v1099
        %v1101 = vpop.xlane.xlu0 %1100
        %v1102 = vrcp.pop %v1101
        %v1103 = vmul.f32 %v1098, %v1102
        %1104 = vrot.lane.b32.xlu0 %v287, 32
        %v1105 = vpop.permute.xlu0 %1104
        %v1108 = vsel %vm367, %v1103, 0
        %1110 = vmatprep.subr.mxu0 0.0
        %1111 = vmatpush1.msra.mxu0 %v1105
        %1112 = vmatprep.subr.mxu0 0.0
        %1113 = vmatpush1.msra.mxu0 0.0
        %1114 = vmatprep.subr.mxu0 0.0
        %1115 = vmatpush1.msra.mxu0 0.0
        %1116 = vmatprep.subr.mxu0 0.0
        %1117 = vmatpush1.msra.mxu0 0.0
        %1118 = vmatprep.subr.mxu0 0.0
        %1119 = vmatpush1.msra.mxu0 0.0
        %1120 = vmatprep.subr.mxu0 0.0
        %1121 = vmatpush1.msra.mxu0 0.0
        %1122 = vmatprep.subr.mxu0 0.0
        %1123 = vmatpush1.msra.mxu0 0.0
        %1124 = vmatprep.subr.mxu0 0.0
        %1125 = vmatpush1.msra.mxu0 0.0
        %1126 = vmatprep.subr.mxu0 0.0
        %1127 = vmatpush1.msra.mxu0 0.0
        %1128 = vmatprep.subr.mxu0 0.0
        %1129 = vmatpush1.msra.mxu0 0.0
        %1130 = vmatprep.subr.mxu0 0.0
        %1131 = vmatpush1.msra.mxu0 0.0
        %1132 = vmatprep.subr.mxu0 0.0
        %1133 = vmatpush1.msra.mxu0 0.0
        %1134 = vmatprep.subr.mxu0 0.0
        %1135 = vmatpush1.msra.mxu0 0.0
        %1136 = vmatprep.subr.mxu0 0.0
        %1137 = vmatpush1.msra.mxu0 0.0
        %1138 = vmatprep.subr.mxu0 0.0
        %1139 = vmatpush1.msra.mxu0 0.0
        %1140 = vmatprep.subr.mxu0 0.0
        %1141 = vmatpush1.msra.mxu0 0.0
        %1142 = vmatprep.subr.mxu0 0.0
        %1143 = vmatpush1.msra.mxu0 0.0
        %1144 = vmatprep.subr.mxu0 0.0
        %1145 = vmatpush1.msra.mxu0 0.0
        %1146 = vmatprep.subr.mxu0 0.0
        %1147 = vmatpush1.msra.mxu0 0.0
        %1148 = vmatprep.subr.mxu0 0.0
        %1149 = vmatpush1.msra.mxu0 0.0
        %1150 = vmatprep.subr.mxu0 0.0
        %1151 = vmatpush1.msra.mxu0 0.0
        %1152 = vmatprep.subr.mxu0 0.0
        %1153 = vmatpush1.msra.mxu0 0.0
        %1154 = vmatprep.subr.mxu0 0.0
        %1155 = vmatpush1.msra.mxu0 0.0
        %1156 = vmatprep.subr.mxu0 0.0
        %1157 = vmatpush1.msra.mxu0 0.0
        %1158 = vmatprep.subr.mxu0 0.0
        %1159 = vmatpush1.msra.mxu0 0.0
        %1160 = vmatprep.subr.mxu0 0.0
        %1161 = vmatpush1.msra.mxu0 0.0
        %1162 = vmatprep.subr.mxu0 0.0
        %1163 = vmatpush1.msra.mxu0 0.0
        %1164 = vmatprep.subr.mxu0 0.0
        %1165 = vmatpush1.msra.mxu0 0.0
        %1166 = vmatprep.subr.mxu0 0.0
        %1167 = vmatpush1.msra.mxu0 0.0
        %1168 = vmatprep.subr.mxu0 0.0
        %1169 = vmatpush1.msra.mxu0 0.0
        %1170 = vmatprep.subr.mxu0 0.0
        %1171 = vmatpush1.msra.mxu0 0.0
        %1172 = vmatprep.subr.mxu0 0.0
        %1173 = vmatpush1.msra.mxu0 0.0
        %1174 = vmatprep.mubr.f32.mxu0 0.0
        %1175 = vmatmul.mubr.f32.gmra.mrb[0].mxu0 %v1108
        %v1176 = vpop.f32.mrb[0].mxu0
        %v1177 = vadd.f32 0.0, %v1176
        %v1178 = vpop.f32.mrb[0].mxu0
        %1179 = vdwg.mxu0
        %v1180 = vld [vmem:[%s3 + $0x60] sm:$0xff]
        %v1181 = vld [vmem:[%s3 + $0x68] sm:$0xff]
        %v1182 = vld [vmem:[%s3 + $0x70] sm:$0xff]
        %v1183 = vld [vmem:[%s3 + $0x78] sm:$0xff]
        %v1185 = vsel %vm214, %v1177, 0
        %1187 = vmatprep.subr.mxu0 0.0
        %1188 = vmatpush1.msra.mxu0 %v1180
        %1189 = vmatprep.subr.mxu0 0.0
        %1190 = vmatpush1.msra.mxu0 %v1181
        %1191 = vmatprep.subr.mxu0 0.0
        %1192 = vmatpush1.msra.mxu0 %v1182
        %1193 = vmatprep.subr.mxu0 0.0
        %1194 = vmatpush1.msra.mxu0 %v1183
        %1195 = vmatprep.subr.mxu0 0.0
        %1196 = vmatpush1.msra.mxu0 0.0
        %1197 = vmatprep.subr.mxu0 0.0
        %1198 = vmatpush1.msra.mxu0 0.0
        %1199 = vmatprep.subr.mxu0 0.0
        %1200 = vmatpush1.msra.mxu0 0.0
        %1201 = vmatprep.subr.mxu0 0.0
        %1202 = vmatpush1.msra.mxu0 0.0
        %1203 = vmatprep.subr.mxu0 0.0
        %1204 = vmatpush1.msra.mxu0 0.0
        %1205 = vmatprep.subr.mxu0 0.0
        %1206 = vmatpush1.msra.mxu0 0.0
        %1207 = vmatprep.subr.mxu0 0.0
        %1208 = vmatpush1.msra.mxu0 0.0
        %1209 = vmatprep.subr.mxu0 0.0
        %1210 = vmatpush1.msra.mxu0 0.0
        %1211 = vmatprep.subr.mxu0 0.0
        %1212 = vmatpush1.msra.mxu0 0.0
        %1213 = vmatprep.subr.mxu0 0.0
        %1214 = vmatpush1.msra.mxu0 0.0
        %1215 = vmatprep.subr.mxu0 0.0
        %1216 = vmatpush1.msra.mxu0 0.0
        %1217 = vmatprep.subr.mxu0 0.0
        %1218 = vmatpush1.msra.mxu0 0.0
        %1219 = vmatprep.subr.mxu0 0.0
        %1220 = vmatpush1.msra.mxu0 0.0
        %1221 = vmatprep.subr.mxu0 0.0
        %1222 = vmatpush1.msra.mxu0 0.0
        %1223 = vmatprep.subr.mxu0 0.0
        %1224 = vmatpush1.msra.mxu0 0.0
        %1225 = vmatprep.subr.mxu0 0.0
        %1226 = vmatpush1.msra.mxu0 0.0
        %1227 = vmatprep.subr.mxu0 0.0
        %1228 = vmatpush1.msra.mxu0 0.0
        %1229 = vmatprep.subr.mxu0 0.0
        %1230 = vmatpush1.msra.mxu0 0.0
        %1231 = vmatprep.subr.mxu0 0.0
        %1232 = vmatpush1.msra.mxu0 0.0
        %1233 = vmatprep.subr.mxu0 0.0
        %1234 = vmatpush1.msra.mxu0 0.0
        %1235 = vmatprep.subr.mxu0 0.0
        %1236 = vmatpush1.msra.mxu0 0.0
        %1237 = vmatprep.subr.mxu0 0.0
        %1238 = vmatpush1.msra.mxu0 0.0
        %1239 = vmatprep.subr.mxu0 0.0
        %1240 = vmatpush1.msra.mxu0 0.0
        %1241 = vmatprep.subr.mxu0 0.0
        %1242 = vmatpush1.msra.mxu0 0.0
        %1243 = vmatprep.subr.mxu0 0.0
        %1244 = vmatpush1.msra.mxu0 0.0
        %1245 = vmatprep.subr.mxu0 0.0
        %1246 = vmatpush1.msra.mxu0 0.0
        %1247 = vmatprep.subr.mxu0 0.0
        %1248 = vmatpush1.msra.mxu0 0.0
        %1249 = vmatprep.subr.mxu0 0.0
        %1250 = vmatpush1.msra.mxu0 0.0
        %1251 = vmatprep.mubr.f32.mxu0 0.0
        %1252 = vmatmul.mubr.f32.gmra.mrb[0].mxu0 %v1185
        %v1253 = vpop.f32.mrb[0].mxu0
        %v1254 = vadd.f32 0.0, %v1253
        %v1255 = vpop.f32.mrb[0].mxu0
        %1256 = vdwg.mxu0
        %v1257 = vadd.f32 %v1014, %v1254
        %1258 = vst.msk [vmem:[%s188] sm:$0xff] %vm214, %v1257
        %s1259 = sand.u32 %s115, 1
        %s1260 = scalar_lea.sflag [#allocation3], %s1259
        %s1261 = sand.u32 %s115, 1
        %s1262 = smul.addr %s1261, 8
        %s1263 = scalar_lea.vmem [#allocation2], %s1262
        // Predicated region
        $region37: #{tpu_custom_call.1} parent=35 // pred_check
          %p1264 = pneg %p125
        $region38: #{tpu_custom_call.1} parent=35 // pred_check_branch
          %1266 = sbr.rel (%p1264) target = $region40
        $region39: #{tpu_custom_call.1} parent=35 // pred_region
          %s1268 = ssub.s32 128, 128
          %1269 = vsyncadd %s1260, %s1268
          %s1270 = smul.addr %s18, 128
          %s1271 = scalar_lea.hbm %s4, %s1270
          %s1273 = sshll.u32 %s1263, 4
          %s1274 = int_to_ptr.vmem [resolvable:$true] %s1273
          %1276 = dma.vmem_to_hbm [thread:$0]  %s1274, 128, %s1271, %s1260
        $region40: #{tpu_custom_call.1} parent=35 // pred_fallthru
          _
      $region36: #{tpu_custom_call.1} parent=5 // pred_fallthru
        _
      %p1277 = scmp.le.s32.totalorder 2, %s13
      // Predicated region
      $region41: #{tpu_custom_call.1} parent=5 // pred_check
        %p1278 = pneg %p1277
      $region42: #{tpu_custom_call.1} parent=5 // pred_check_branch
        %1280 = sbr.rel (%p1278) target = $region44
      $region43: #{tpu_custom_call.1} parent=5 // pred_region
        %s1281 = ssub.s32 %s13, 2
        // Predicated region
        $region45: #{tpu_custom_call.1} parent=43 // pred_check
          %p1282 = pneg %p131
        $region46: #{tpu_custom_call.1} parent=43 // pred_check_branch
          %1284 = sbr.rel (%p1282) target = $region48
        $region47: #{tpu_custom_call.1} parent=43 // pred_region
          %s1285 = sand.u32 %s116, 1
          %s1286 = scalar_lea.sflag [#allocation3], %s1285
          %s1287 = sand.u32 %s116, 1
          %s1288 = smul.addr %s1287, 8
          %s1289 = scalar_lea.vmem [#allocation2], %s1288
          %1290 = dma.done %s1286, 128
        $region48: #{tpu_custom_call.1} parent=43 // pred_fallthru
          _
      $region44: #{tpu_custom_call.1} parent=5 // pred_fallthru
        _
    $region6: #{tpu_custom_call.1} parent=1 // loop_footer
      %s17 = sadd.s32 1, %s13
    $region7: #{tpu_custom_call.1} parent=1 // loop_footer_branch
      %12 = sbr.rel target = $region3
    $region8: #{tpu_custom_call.1} parent=1 // loop_exit
      _
    %1291 = vsyncpa [#allocation3], 1
    %s1292 = scalar_lea.sflag [#allocation3], 1
    %1293 = vsyncpa %s1292, 1

</llo_original>
